<compile_context>
chip_gen: v7x
topology: tpu7x:2x2x1
jax: 0.10.0
libtpu: 0.0.40
codegen_flags: <defaults>
</compile_context>

<pallas_src>
import functools

import jax
import jax.numpy as jnp
from jax.experimental import pallas as pl
from jax.experimental.pallas import tpu as pltpu


LANE = 128


def _round_up(x, m):
    return ((x + m - 1) // m) * m


# ----------------------------- Pallas kernel ------------------------------ #
def _rgcn2_kernel(a_ref, x_ref,
                  wv1_ref, loop1_ref, b1_ref,
                  wv2_ref, loop2_ref, b2_ref,
                  out_ref, y_ref, *, num_rels, sub):
    """Fused two-layer RGCN forward (single grid step, all VMEM-resident).

    a_ref:     (N, (R+1)*N) bf16  per-relation adjacency + identity block
                                  appended as "relation" R (folds self-loop)
    x_ref:     (N, D)       bf16  node features (D lane-padded)
    wv*_ref:   (R*s*s, D)   f32   strided-diagonal BDD weights: row
                                  r*s*s + i*s + o holds W[r, b, i, o] at lane
                                  b*s + o (zeros elsewhere / in padding)
    loop*_ref: (D, D)       bf16  self-loop weights
    b*_ref:    (1, D)       f32   biases
    out_ref:   (N, D)       f32   layer-2 output
    y_ref:     ((R+1)*N, D) bf16  scratch: stacked messages (reused per layer)
    """
    n = x_ref.shape[0]
    d = x_ref.shape[1]
    ss = sub * sub

    def layer(x_bf, wv_ref, loop_ref, b_ref, apply_relu):
        xf = x_bf.astype(jnp.float32)

        # Lane-shifted copies of X needed by the BDD sub-block pairs (XLU work,
        # shared across relations).  Shift (o - i) aligns input lane b*s+i with
        # output lane b*s+o; wrapped lanes always meet zero weights.
        rolled = {0: xf}
        for i in range(sub):
            for o in range(sub):
                sh = (o - i) % d
                if sh not in rolled:
                    rolled[sh] = pltpu.roll(xf, sh, 1)

        wv = wv_ref[...]                                   # (R*s*s, D) f32

        # Y_r = X @ W_r on the VPU: s*s FMAs per relation, staged in bf16.
        for r in range(num_rels):
            acc_y = None
            for i in range(sub):
                for o in range(sub):
                    k = r * ss + i * sub + o
                    term = rolled[(o - i) % d] * wv[k:k + 1, :]
                    acc_y = term if acc_y is None else acc_y + term
            y_ref[r * n:(r + 1) * n, :] = acc_y.astype(y_ref.dtype)

        # Self-loop message staged as the extra "relation" block (MXU).
        y_ref[num_rels * n:(num_rels + 1) * n, :] = jnp.dot(
            x_bf, loop_ref[...],
            preferred_element_type=jnp.float32).astype(y_ref.dtype)

        # One fused MXU matmul:  sum_r A_r @ Y_r  +  I @ (X @ W_loop).
        acc = jnp.dot(a_ref[...], y_ref[...],
                      preferred_element_type=jnp.float32) + b_ref[...]
        if apply_relu:
            acc = jnp.maximum(acc, 0.0)
        return acc

    # Layer 1 (+ReLU) stays in registers; layer 2 writes the final output.
    h = layer(x_ref[...], wv1_ref, loop1_ref, b1_ref, apply_relu=True)
    # TODO(synk): nn.Dropout(0.2) between layers is eval-mode identity here.
    out = layer(h.astype(jnp.bfloat16), wv2_ref, loop2_ref, b2_ref,
                apply_relu=False)
    out_ref[...] = out


def rgcn_fused_forward(a_ext, x, wv1, loop1, bias1, wv2, loop2, bias2,
                       *, num_rels, sub):
    n, dp = x.shape
    kernel = functools.partial(_rgcn2_kernel, num_rels=num_rels, sub=sub)
    full = lambda i: (0, 0)
    # TODO(synk): at real graph sizes, tile the destination-node rows (>=128
    # rows per grid step, marked "parallel" so v7x's 2 TensorCores split them),
    # add a source/K grid axis (or a scalar-prefetched CSR/edge-tile path) for
    # the O(R*N^2) A_cat, and set vmem_limit_bytes explicitly.  At N=32 a
    # single VMEM-resident block (~0.5 MiB total) is both smallest and fastest.
    return pl.pallas_call(
        kernel,
        out_shape=jax.ShapeDtypeStruct((n, dp), jnp.float32),
        grid_spec=pltpu.PrefetchScalarGridSpec(
            num_scalar_prefetch=0,
            grid=(1,),
            in_specs=[
                pl.BlockSpec((n, (num_rels + 1) * n), full),     # A_cat + I
                pl.BlockSpec((n, dp), full),                     # X
                pl.BlockSpec((num_rels * sub * sub, dp), full),  # BDD W1
                pl.BlockSpec((dp, dp), full),                    # loop1
                pl.BlockSpec((1, dp), full),                     # bias1
                pl.BlockSpec((num_rels * sub * sub, dp), full),  # BDD W2
                pl.BlockSpec((dp, dp), full),                    # loop2
                pl.BlockSpec((1, dp), full),                     # bias2
            ],
            out_specs=pl.BlockSpec((n, dp), full),
            scratch_shapes=[
                pltpu.VMEM(((num_rels + 1) * n, dp), jnp.bfloat16)],
        ),
        compiler_params=pltpu.CompilerParams(
            dimension_semantics=("arbitrary",)),
    )(a_ext, x, wv1, loop1, bias1, wv2, loop2, bias2)


# ------------------------------- JAX glue --------------------------------- #
def bdd_to_strided(w_bdd, dp):
    """(R, B, s, s) BDD blocks -> (R*s*s, dp) strided-diagonal weight rows.

    Row r*s*s + i*s + o carries W[r, b, i, o] at lane b*s + o (zeros elsewhere
    and in the lane padding), so Y_r = X @ W_r becomes s*s VPU FMAs against
    lane-shifted copies of X.  Keeps the 99%-zero dense W_r off the MXU.
    """
    r, nb, si, so = w_bdd.shape
    assert si == so, "square BDD sub-blocks expected (in_feat == out_feat)"
    s = si
    d = nb * s
    lane = jnp.arange(d)
    # sel[b, o, q] = 1 iff q == b*s + o
    sel = (lane[None, None, :] ==
           (jnp.arange(nb)[:, None, None] * s +
            jnp.arange(s)[None, :, None])).astype(w_bdd.dtype)
    vec = jnp.einsum('rbio,boq->rioq', w_bdd, sel).reshape(r * s * s, d)
    return jnp.pad(vec, ((0, 0), (0, dp - d)))


def build_rel_adjacency_ext(src, dst, etype, norm, num_rels, num_nodes):
    """A_ext[v, r*N + u] = sum of norms of relation-r edges u -> v, with an
    identity block appended as relation R (folds the self-loop term)."""
    # TODO(synk): dense (R, N, N) adjacency is O(R*N^2); switch to a
    # scalar-prefetched CSR/edge-tile formulation when N or R grows.
    a = jnp.zeros((num_rels, num_nodes, num_nodes), jnp.float32)
    a = a.at[etype, dst, src].add(norm)
    a_cat = a.transpose(1, 0, 2).reshape(num_nodes, num_rels * num_nodes)
    return jnp.concatenate(
        [a_cat, jnp.eye(num_nodes, dtype=a_cat.dtype)], axis=1)


def _pad_last(x, target):
    pad = target - x.shape[-1]
    if pad == 0:
        return x
    return jnp.pad(x, [(0, 0)] * (x.ndim - 1) + [(0, pad)])


def _pad_last2(x, target):
    pads = ([(0, 0)] * (x.ndim - 2)
            + [(0, target - x.shape[-2]), (0, target - x.shape[-1])])
    return jnp.pad(x, pads)


def rgcn_forward(params, nids, src, dst, etype, norm, num_rels):
    h_dim = params['emb'].shape[1]
    sub = params['w1_bdd'].shape[2]
    dp = _round_up(h_dim, LANE)          # 200 -> 256 lane-dense padding

    # x = self.emb(nids)   (gather is glue in plain JAX)
    x = params['emb'][nids]
    n = x.shape[0]

    a_ext = build_rel_adjacency_ext(
        src, dst, etype, norm, num_rels, n).astype(jnp.bfloat16)
    wv1 = bdd_to_strided(params['w1_bdd'], dp)          # f32 (VPU operand)
    wv2 = bdd_to_strided(params['w2_bdd'], dp)
    loop1 = _pad_last2(params['loop1'], dp).astype(jnp.bfloat16)
    loop2 = _pad_last2(params['loop2'], dp).astype(jnp.bfloat16)
    bias1 = _pad_last(params['bias1'], dp)
    bias2 = _pad_last(params['bias2'], dp)
    x_p = _pad_last(x, dp).astype(jnp.bfloat16)

    out = rgcn_fused_forward(a_ext, x_p, wv1, loop1, bias1,
                             wv2, loop2, bias2, num_rels=num_rels, sub=sub)
    # TODO(synk): trailing self.dropout(h) is eval-mode identity.
    return out[:, :h_dim]                # drop the zero lane-padding


# ------------------------ pure-JAX reference check ------------------------ #
def _bdd_to_dense(w_bdd):
    r, nb, si, so = w_bdd.shape
    eye = jnp.eye(nb, dtype=w_bdd.dtype)
    return jnp.einsum('rbio,bc->rbico', w_bdd, eye).reshape(r, nb * si, nb * so)


def _reference_forward(params, nids, src, dst, etype, norm, num_rels):
    """Dense-weight reference mirroring the kernel's bf16/f32 numerics."""
    hi = jax.lax.Precision.HIGHEST
    h_dim = params['emb'].shape[1]
    dp = _round_up(h_dim, LANE)
    x = params['emb'][nids]
    n = x.shape[0]
    a_ext = build_rel_adjacency_ext(src, dst, etype, norm, num_rels, n)
    a_ext = a_ext.astype(jnp.bfloat16).astype(jnp.float32)
    w1 = _pad_last2(_bdd_to_dense(params['w1_bdd']), dp)
    w2 = _pad_last2(_bdd_to_dense(params['w2_bdd']), dp)
    loop1 = _pad_last2(params['loop1'], dp).astype(jnp.bfloat16).astype(jnp.float32)
    loop2 = _pad_last2(params['loop2'], dp).astype(jnp.bfloat16).astype(jnp.float32)
    bias1 = _pad_last(params['bias1'], dp)
    bias2 = _pad_last(params['bias2'], dp)

    def layer(x_bf, w_dense, loop_w, bias, apply_relu):
        xf = x_bf.astype(jnp.float32)
        ys = [jnp.dot(xf, w_dense[r], precision=hi).astype(jnp.bfloat16)
              for r in range(num_rels)]
        ys.append(jnp.dot(xf, loop_w, precision=hi).astype(jnp.bfloat16))
        y = jnp.concatenate(ys, axis=0).astype(jnp.float32)
        acc = jnp.dot(a_ext, y, precision=hi) + bias
        return jnp.maximum(acc, 0.0) if apply_relu else acc

    x_bf = _pad_last(x, dp).astype(jnp.bfloat16)
    h = layer(x_bf, w1, loop1, bias1, True)
    out = layer(h.astype(jnp.bfloat16), w2, loop2, bias2, False)
    return out[:, :h_dim]


# --------------------------------- main ------------------------------------ #
if __name__ == "__main__":
    # num_bases=100 is hard-coded in RGCN.__init__, so h_dim must be a
    # multiple of 100 -> h_dim=200 gives 2x2 BDD sub-blocks (original 500).
    NUM_NODES_TOTAL = 64      # embedding table rows
    H_DIM = 200               # h_dim
    NUM_RELS = 4
    NUM_BASES = 100
    SUB = H_DIM // NUM_BASES
    N = 32                    # nodes in the (sub)graph
    E = 96                    # edges

    key = jax.random.PRNGKey(0)
    k = jax.random.split(key, 10)

    params = {
        'emb':    0.1 * jax.random.normal(k[0], (NUM_NODES_TOTAL, H_DIM), jnp.float32),
        'w1_bdd': 0.1 * jax.random.normal(k[1], (NUM_RELS, NUM_BASES, SUB, SUB), jnp.float32),
        'loop1':  0.1 * jax.random.normal(k[2], (H_DIM, H_DIM), jnp.float32),
        'bias1':  jnp.zeros((1, H_DIM), jnp.float32),
        'w2_bdd': 0.1 * jax.random.normal(k[3], (NUM_RELS, NUM_BASES, SUB, SUB), jnp.float32),
        'loop2':  0.1 * jax.random.normal(k[4], (H_DIM, H_DIM), jnp.float32),
        'bias2':  jnp.zeros((1, H_DIM), jnp.float32),
    }

    # Deterministic synthetic graph.
    nids = jax.random.randint(k[5], (N,), 0, NUM_NODES_TOTAL)
    src = jax.random.randint(k[6], (E,), 0, N)
    dst = jax.random.randint(k[7], (E,), 0, N)
    etype = jax.random.randint(k[8], (E,), 0, NUM_RELS)
    # norm = 1 / in-degree(dst)  (DGL 'norm' edge feature convention)
    deg = jnp.zeros((N,), jnp.float32).at[dst].add(1.0)
    norm = (1.0 / jnp.maximum(deg, 1.0))[dst]

    fwd = jax.jit(functools.partial(rgcn_forward, num_rels=NUM_RELS))
    out = fwd(params, nids, src, dst, etype, norm)
    jax.block_until_ready(out)
    assert out.shape == (N, H_DIM) and out.dtype == jnp.float32

    # Sanity check against a pure-JAX reference with matching numerics.
    ref = _reference_forward(params, nids, src, dst, etype, norm, NUM_RELS)
    err = float(jnp.max(jnp.abs(out - ref)))
    assert err < 5e-3, f"kernel/reference mismatch: max abs err = {err}"

    print("KERNEL_OK")
</pallas_src>

<mosaic_0001>
module attributes {stable_mosaic.version = 11 : i64} {
  func.func private @main(%arg0: i32) attributes {dimension_semantics = [#tpu.dimension_semantics<core_parallel>], iteration_bounds = array<i64: 2>, tpu.core_type = #tpu.core_type<sc_scalar_subcore>, window_params = []} {
    return
  }
}

module attributes {stable_mosaic.version = 11 : i64} {
  func.func private @main(%arg0: i32) attributes {dimension_semantics = [#tpu.dimension_semantics<core_parallel>], iteration_bounds = array<i64: 2>, tpu.core_type = #tpu.core_type<sc_scalar_subcore>, window_params = []} {
    return
  }
}

module attributes {stable_mosaic.version = 11 : i64} {
  func.func @_rgcn2_kernel(%arg0: i32, %arg1: memref<32x160xbf16, #tpu.memory_space<vmem>>, %arg2: memref<32x256xbf16, #tpu.memory_space<vmem>>, %arg3: memref<16x256xf32, #tpu.memory_space<vmem>>, %arg4: memref<256x256xbf16, #tpu.memory_space<vmem>>, %arg5: memref<1x256xf32, #tpu.memory_space<vmem>>, %arg6: memref<16x256xf32, #tpu.memory_space<vmem>>, %arg7: memref<256x256xbf16, #tpu.memory_space<vmem>>, %arg8: memref<1x256xf32, #tpu.memory_space<vmem>>, %arg9: memref<32x256xf32, #tpu.memory_space<vmem>>, %arg10: memref<160x256xbf16, #tpu.memory_space<vmem>>) attributes {dimension_semantics = [#tpu.dimension_semantics<arbitrary>], iteration_bounds = array<i64: 1>, scalar_prefetch = 0 : i64, scratch_operands = 1 : i64, tpu.core_type = #tpu.core_type<tc>, window_params = [{pipeline_mode = #tpu.pipeline_mode<synchronous>, transform_indices = @transform_0, window_bounds = array<i64: 32, 160>}, {pipeline_mode = #tpu.pipeline_mode<synchronous>, transform_indices = @transform_1, window_bounds = array<i64: 32, 256>}, {pipeline_mode = #tpu.pipeline_mode<synchronous>, transform_indices = @transform_2, window_bounds = array<i64: 16, 256>}, {pipeline_mode = #tpu.pipeline_mode<synchronous>, transform_indices = @transform_3, window_bounds = array<i64: 256, 256>}, {pipeline_mode = #tpu.pipeline_mode<synchronous>, transform_indices = @transform_4, window_bounds = array<i64: 1, 256>}, {pipeline_mode = #tpu.pipeline_mode<synchronous>, transform_indices = @transform_5, window_bounds = array<i64: 16, 256>}, {pipeline_mode = #tpu.pipeline_mode<synchronous>, transform_indices = @transform_6, window_bounds = array<i64: 256, 256>}, {pipeline_mode = #tpu.pipeline_mode<synchronous>, transform_indices = @transform_7, window_bounds = array<i64: 1, 256>}, {pipeline_mode = #tpu.pipeline_mode<synchronous>, transform_indices = @transform_8, window_bounds = array<i64: 32, 256>}]} {
    %c0 = arith.constant 0 : index
    %c0_0 = arith.constant 0 : index
    %0 = vector.load %arg2[%c0, %c0_0] : memref<32x256xbf16, #tpu.memory_space<vmem>>, vector<32x256xbf16>
    %1 = arith.extf %0 : vector<32x256xbf16> to vector<32x256xf32>
    %c1_i32 = arith.constant 1 : i32
    %2 = tpu.dynamic_rotate %1 by %c1_i32 dim 1 : vector<32x256xf32>, i32 -> vector<32x256xf32>
    %c255_i32 = arith.constant 255 : i32
    %3 = tpu.dynamic_rotate %1 by %c255_i32 dim 1 : vector<32x256xf32>, i32 -> vector<32x256xf32>
    %c0_1 = arith.constant 0 : index
    %c0_2 = arith.constant 0 : index
    %4 = vector.load %arg3[%c0_1, %c0_2] : memref<16x256xf32, #tpu.memory_space<vmem>>, vector<16x256xf32>
    %5 = vector.extract_strided_slice %4 {offsets = [0, 0], sizes = [1, 256], strides = [1, 1]} : vector<16x256xf32> to vector<1x256xf32>
    %6 = vector.broadcast %5 : vector<1x256xf32> to vector<32x256xf32>
    %7 = arith.mulf %1, %6 : vector<32x256xf32>
    %8 = vector.extract_strided_slice %4 {offsets = [1, 0], sizes = [1, 256], strides = [1, 1]} : vector<16x256xf32> to vector<1x256xf32>
    %9 = vector.broadcast %8 : vector<1x256xf32> to vector<32x256xf32>
    %10 = arith.mulf %2, %9 : vector<32x256xf32>
    %11 = arith.addf %7, %10 : vector<32x256xf32>
    %12 = vector.extract_strided_slice %4 {offsets = [2, 0], sizes = [1, 256], strides = [1, 1]} : vector<16x256xf32> to vector<1x256xf32>
    %13 = vector.broadcast %12 : vector<1x256xf32> to vector<32x256xf32>
    %14 = arith.mulf %3, %13 : vector<32x256xf32>
    %15 = arith.addf %11, %14 : vector<32x256xf32>
    %16 = vector.extract_strided_slice %4 {offsets = [3, 0], sizes = [1, 256], strides = [1, 1]} : vector<16x256xf32> to vector<1x256xf32>
    %17 = vector.broadcast %16 : vector<1x256xf32> to vector<32x256xf32>
    %18 = arith.mulf %1, %17 : vector<32x256xf32>
    %19 = arith.addf %15, %18 : vector<32x256xf32>
    %20 = arith.truncf %19 : vector<32x256xf32> to vector<32x256xbf16>
    %c0_3 = arith.constant 0 : index
    %c0_4 = arith.constant 0 : index
    %21 = vector.load %arg10[%c0_3, %c0_4] : memref<160x256xbf16, #tpu.memory_space<vmem>>, vector<32x256xbf16>
    tpu.vector_store %arg10[%c0_3, %c0_4], %20 {strides = array<i32>} : memref<160x256xbf16, #tpu.memory_space<vmem>>, vector<32x256xbf16>,
    %22 = vector.extract_strided_slice %4 {offsets = [4, 0], sizes = [1, 256], strides = [1, 1]} : vector<16x256xf32> to vector<1x256xf32>
    %23 = vector.broadcast %22 : vector<1x256xf32> to vector<32x256xf32>
    %24 = arith.mulf %1, %23 : vector<32x256xf32>
    %25 = vector.extract_strided_slice %4 {offsets = [5, 0], sizes = [1, 256], strides = [1, 1]} : vector<16x256xf32> to vector<1x256xf32>
    %26 = vector.broadcast %25 : vector<1x256xf32> to vector<32x256xf32>
    %27 = arith.mulf %2, %26 : vector<32x256xf32>
    %28 = arith.addf %24, %27 : vector<32x256xf32>
    %29 = vector.extract_strided_slice %4 {offsets = [6, 0], sizes = [1, 256], strides = [1, 1]} : vector<16x256xf32> to vector<1x256xf32>
    %30 = vector.broadcast %29 : vector<1x256xf32> to vector<32x256xf32>
    %31 = arith.mulf %3, %30 : vector<32x256xf32>
    %32 = arith.addf %28, %31 : vector<32x256xf32>
    %33 = vector.extract_strided_slice %4 {offsets = [7, 0], sizes = [1, 256], strides = [1, 1]} : vector<16x256xf32> to vector<1x256xf32>
    %34 = vector.broadcast %33 : vector<1x256xf32> to vector<32x256xf32>
    %35 = arith.mulf %1, %34 : vector<32x256xf32>
    %36 = arith.addf %32, %35 : vector<32x256xf32>
    %37 = arith.truncf %36 : vector<32x256xf32> to vector<32x256xbf16>
    %c32 = arith.constant 32 : index
    %c0_5 = arith.constant 0 : index
    %38 = vector.load %arg10[%c32, %c0_5] : memref<160x256xbf16, #tpu.memory_space<vmem>>, vector<32x256xbf16>
    tpu.vector_store %arg10[%c32, %c0_5], %37 {strides = array<i32>} : memref<160x256xbf16, #tpu.memory_space<vmem>>, vector<32x256xbf16>,
    %39 = vector.extract_strided_slice %4 {offsets = [8, 0], sizes = [1, 256], strides = [1, 1]} : vector<16x256xf32> to vector<1x256xf32>
    %40 = vector.broadcast %39 : vector<1x256xf32> to vector<32x256xf32>
    %41 = arith.mulf %1, %40 : vector<32x256xf32>
    %42 = vector.extract_strided_slice %4 {offsets = [9, 0], sizes = [1, 256], strides = [1, 1]} : vector<16x256xf32> to vector<1x256xf32>
    %43 = vector.broadcast %42 : vector<1x256xf32> to vector<32x256xf32>
    %44 = arith.mulf %2, %43 : vector<32x256xf32>
    %45 = arith.addf %41, %44 : vector<32x256xf32>
    %46 = vector.extract_strided_slice %4 {offsets = [10, 0], sizes = [1, 256], strides = [1, 1]} : vector<16x256xf32> to vector<1x256xf32>
    %47 = vector.broadcast %46 : vector<1x256xf32> to vector<32x256xf32>
    %48 = arith.mulf %3, %47 : vector<32x256xf32>
    %49 = arith.addf %45, %48 : vector<32x256xf32>
    %50 = vector.extract_strided_slice %4 {offsets = [11, 0], sizes = [1, 256], strides = [1, 1]} : vector<16x256xf32> to vector<1x256xf32>
    %51 = vector.broadcast %50 : vector<1x256xf32> to vector<32x256xf32>
    %52 = arith.mulf %1, %51 : vector<32x256xf32>
    %53 = arith.addf %49, %52 : vector<32x256xf32>
    %54 = arith.truncf %53 : vector<32x256xf32> to vector<32x256xbf16>
    %c64 = arith.constant 64 : index
    %c0_6 = arith.constant 0 : index
    %55 = vector.load %arg10[%c64, %c0_6] : memref<160x256xbf16, #tpu.memory_space<vmem>>, vector<32x256xbf16>
    tpu.vector_store %arg10[%c64, %c0_6], %54 {strides = array<i32>} : memref<160x256xbf16, #tpu.memory_space<vmem>>, vector<32x256xbf16>,
    %56 = vector.extract_strided_slice %4 {offsets = [12, 0], sizes = [1, 256], strides = [1, 1]} : vector<16x256xf32> to vector<1x256xf32>
    %57 = vector.broadcast %56 : vector<1x256xf32> to vector<32x256xf32>
    %58 = arith.mulf %1, %57 : vector<32x256xf32>
    %59 = vector.extract_strided_slice %4 {offsets = [13, 0], sizes = [1, 256], strides = [1, 1]} : vector<16x256xf32> to vector<1x256xf32>
    %60 = vector.broadcast %59 : vector<1x256xf32> to vector<32x256xf32>
    %61 = arith.mulf %2, %60 : vector<32x256xf32>
    %62 = arith.addf %58, %61 : vector<32x256xf32>
    %63 = vector.extract_strided_slice %4 {offsets = [14, 0], sizes = [1, 256], strides = [1, 1]} : vector<16x256xf32> to vector<1x256xf32>
    %64 = vector.broadcast %63 : vector<1x256xf32> to vector<32x256xf32>
    %65 = arith.mulf %3, %64 : vector<32x256xf32>
    %66 = arith.addf %62, %65 : vector<32x256xf32>
    %67 = vector.extract_strided_slice %4 {offsets = [15, 0], sizes = [1, 256], strides = [1, 1]} : vector<16x256xf32> to vector<1x256xf32>
    %68 = vector.broadcast %67 : vector<1x256xf32> to vector<32x256xf32>
    %69 = arith.mulf %1, %68 : vector<32x256xf32>
    %70 = arith.addf %66, %69 : vector<32x256xf32>
    %71 = arith.truncf %70 : vector<32x256xf32> to vector<32x256xbf16>
    %c96 = arith.constant 96 : index
    %c0_7 = arith.constant 0 : index
    %72 = vector.load %arg10[%c96, %c0_7] : memref<160x256xbf16, #tpu.memory_space<vmem>>, vector<32x256xbf16>
    tpu.vector_store %arg10[%c96, %c0_7], %71 {strides = array<i32>} : memref<160x256xbf16, #tpu.memory_space<vmem>>, vector<32x256xbf16>,
    %c0_8 = arith.constant 0 : index
    %c0_9 = arith.constant 0 : index
    %73 = vector.load %arg4[%c0_8, %c0_9] : memref<256x256xbf16, #tpu.memory_space<vmem>>, vector<256x256xbf16>
    %cst = arith.constant dense<0.000000e+00> : vector<32x256xf32>
    %74 = tpu.matmul %0, %73, %cst {dimension_numbers = #tpu.dot_dimension_numbers<[1], [0], [0], [1], [0, 0, 1, 1], [], []>} : vector<32x256xbf16>, vector<256x256xbf16>, vector<32x256xf32> -> vector<32x256xf32>
    %75 = arith.truncf %74 : vector<32x256xf32> to vector<32x256xbf16>
    %c128 = arith.constant 128 : index
    %c0_10 = arith.constant 0 : index
    %76 = vector.load %arg10[%c128, %c0_10] : memref<160x256xbf16, #tpu.memory_space<vmem>>, vector<32x256xbf16>
    tpu.vector_store %arg10[%c128, %c0_10], %75 {strides = array<i32>} : memref<160x256xbf16, #tpu.memory_space<vmem>>, vector<32x256xbf16>,
    %c0_11 = arith.constant 0 : index
    %c0_12 = arith.constant 0 : index
    %77 = vector.load %arg1[%c0_11, %c0_12] : memref<32x160xbf16, #tpu.memory_space<vmem>>, vector<32x160xbf16>
    %c0_13 = arith.constant 0 : index
    %c0_14 = arith.constant 0 : index
    %78 = vector.load %arg10[%c0_13, %c0_14] : memref<160x256xbf16, #tpu.memory_space<vmem>>, vector<160x256xbf16>
    %cst_15 = arith.constant dense<0.000000e+00> : vector<32x256xf32>
    %79 = tpu.matmul %77, %78, %cst_15 {dimension_numbers = #tpu.dot_dimension_numbers<[1], [0], [0], [1], [0, 0, 1, 1], [], []>} : vector<32x160xbf16>, vector<160x256xbf16>, vector<32x256xf32> -> vector<32x256xf32>
    %c0_16 = arith.constant 0 : index
    %c0_17 = arith.constant 0 : index
    %80 = vector.load %arg5[%c0_16, %c0_17] : memref<1x256xf32, #tpu.memory_space<vmem>>, vector<1x256xf32>
    %81 = vector.broadcast %80 : vector<1x256xf32> to vector<32x256xf32>
    %82 = arith.addf %79, %81 : vector<32x256xf32>
    %cst_18 = arith.constant 0.000000e+00 : f32
    %83 = vector.broadcast %cst_18 : f32 to vector<32x256xf32>
    %84 = arith.maximumf %82, %83 : vector<32x256xf32>
    %85 = arith.truncf %84 : vector<32x256xf32> to vector<32x256xbf16>
    %86 = arith.extf %85 : vector<32x256xbf16> to vector<32x256xf32>
    %c1_i32_19 = arith.constant 1 : i32
    %87 = tpu.dynamic_rotate %86 by %c1_i32_19 dim 1 : vector<32x256xf32>, i32 -> vector<32x256xf32>
    %c255_i32_20 = arith.constant 255 : i32
    %88 = tpu.dynamic_rotate %86 by %c255_i32_20 dim 1 : vector<32x256xf32>, i32 -> vector<32x256xf32>
    %c0_21 = arith.constant 0 : index
    %c0_22 = arith.constant 0 : index
    %89 = vector.load %arg6[%c0_21, %c0_22] : memref<16x256xf32, #tpu.memory_space<vmem>>, vector<16x256xf32>
    %90 = vector.extract_strided_slice %89 {offsets = [0, 0], sizes = [1, 256], strides = [1, 1]} : vector<16x256xf32> to vector<1x256xf32>
    %91 = vector.broadcast %90 : vector<1x256xf32> to vector<32x256xf32>
    %92 = arith.mulf %86, %91 : vector<32x256xf32>
    %93 = vector.extract_strided_slice %89 {offsets = [1, 0], sizes = [1, 256], strides = [1, 1]} : vector<16x256xf32> to vector<1x256xf32>
    %94 = vector.broadcast %93 : vector<1x256xf32> to vector<32x256xf32>
    %95 = arith.mulf %87, %94 : vector<32x256xf32>
    %96 = arith.addf %92, %95 : vector<32x256xf32>
    %97 = vector.extract_strided_slice %89 {offsets = [2, 0], sizes = [1, 256], strides = [1, 1]} : vector<16x256xf32> to vector<1x256xf32>
    %98 = vector.broadcast %97 : vector<1x256xf32> to vector<32x256xf32>
    %99 = arith.mulf %88, %98 : vector<32x256xf32>
    %100 = arith.addf %96, %99 : vector<32x256xf32>
    %101 = vector.extract_strided_slice %89 {offsets = [3, 0], sizes = [1, 256], strides = [1, 1]} : vector<16x256xf32> to vector<1x256xf32>
    %102 = vector.broadcast %101 : vector<1x256xf32> to vector<32x256xf32>
    %103 = arith.mulf %86, %102 : vector<32x256xf32>
    %104 = arith.addf %100, %103 : vector<32x256xf32>
    %105 = arith.truncf %104 : vector<32x256xf32> to vector<32x256xbf16>
    %c0_23 = arith.constant 0 : index
    %c0_24 = arith.constant 0 : index
    %106 = vector.load %arg10[%c0_23, %c0_24] : memref<160x256xbf16, #tpu.memory_space<vmem>>, vector<32x256xbf16>
    tpu.vector_store %arg10[%c0_23, %c0_24], %105 {strides = array<i32>} : memref<160x256xbf16, #tpu.memory_space<vmem>>, vector<32x256xbf16>,
    %107 = vector.extract_strided_slice %89 {offsets = [4, 0], sizes = [1, 256], strides = [1, 1]} : vector<16x256xf32> to vector<1x256xf32>
    %108 = vector.broadcast %107 : vector<1x256xf32> to vector<32x256xf32>
    %109 = arith.mulf %86, %108 : vector<32x256xf32>
    %110 = vector.extract_strided_slice %89 {offsets = [5, 0], sizes = [1, 256], strides = [1, 1]} : vector<16x256xf32> to vector<1x256xf32>
    %111 = vector.broadcast %110 : vector<1x256xf32> to vector<32x256xf32>
    %112 = arith.mulf %87, %111 : vector<32x256xf32>
    %113 = arith.addf %109, %112 : vector<32x256xf32>
    %114 = vector.extract_strided_slice %89 {offsets = [6, 0], sizes = [1, 256], strides = [1, 1]} : vector<16x256xf32> to vector<1x256xf32>
    %115 = vector.broadcast %114 : vector<1x256xf32> to vector<32x256xf32>
    %116 = arith.mulf %88, %115 : vector<32x256xf32>
    %117 = arith.addf %113, %116 : vector<32x256xf32>
    %118 = vector.extract_strided_slice %89 {offsets = [7, 0], sizes = [1, 256], strides = [1, 1]} : vector<16x256xf32> to vector<1x256xf32>
    %119 = vector.broadcast %118 : vector<1x256xf32> to vector<32x256xf32>
    %120 = arith.mulf %86, %119 : vector<32x256xf32>
    %121 = arith.addf %117, %120 : vector<32x256xf32>
    %122 = arith.truncf %121 : vector<32x256xf32> to vector<32x256xbf16>
    %c32_25 = arith.constant 32 : index
    %c0_26 = arith.constant 0 : index
    %123 = vector.load %arg10[%c32_25, %c0_26] : memref<160x256xbf16, #tpu.memory_space<vmem>>, vector<32x256xbf16>
    tpu.vector_store %arg10[%c32_25, %c0_26], %122 {strides = array<i32>} : memref<160x256xbf16, #tpu.memory_space<vmem>>, vector<32x256xbf16>,
    %124 = vector.extract_strided_slice %89 {offsets = [8, 0], sizes = [1, 256], strides = [1, 1]} : vector<16x256xf32> to vector<1x256xf32>
    %125 = vector.broadcast %124 : vector<1x256xf32> to vector<32x256xf32>
    %126 = arith.mulf %86, %125 : vector<32x256xf32>
    %127 = vector.extract_strided_slice %89 {offsets = [9, 0], sizes = [1, 256], strides = [1, 1]} : vector<16x256xf32> to vector<1x256xf32>
    %128 = vector.broadcast %127 : vector<1x256xf32> to vector<32x256xf32>
    %129 = arith.mulf %87, %128 : vector<32x256xf32>
    %130 = arith.addf %126, %129 : vector<32x256xf32>
    %131 = vector.extract_strided_slice %89 {offsets = [10, 0], sizes = [1, 256], strides = [1, 1]} : vector<16x256xf32> to vector<1x256xf32>
    %132 = vector.broadcast %131 : vector<1x256xf32> to vector<32x256xf32>
    %133 = arith.mulf %88, %132 : vector<32x256xf32>
    %134 = arith.addf %130, %133 : vector<32x256xf32>
    %135 = vector.extract_strided_slice %89 {offsets = [11, 0], sizes = [1, 256], strides = [1, 1]} : vector<16x256xf32> to vector<1x256xf32>
    %136 = vector.broadcast %135 : vector<1x256xf32> to vector<32x256xf32>
    %137 = arith.mulf %86, %136 : vector<32x256xf32>
    %138 = arith.addf %134, %137 : vector<32x256xf32>
    %139 = arith.truncf %138 : vector<32x256xf32> to vector<32x256xbf16>
    %c64_27 = arith.constant 64 : index
    %c0_28 = arith.constant 0 : index
    %140 = vector.load %arg10[%c64_27, %c0_28] : memref<160x256xbf16, #tpu.memory_space<vmem>>, vector<32x256xbf16>
    tpu.vector_store %arg10[%c64_27, %c0_28], %139 {strides = array<i32>} : memref<160x256xbf16, #tpu.memory_space<vmem>>, vector<32x256xbf16>,
    %141 = vector.extract_strided_slice %89 {offsets = [12, 0], sizes = [1, 256], strides = [1, 1]} : vector<16x256xf32> to vector<1x256xf32>
    %142 = vector.broadcast %141 : vector<1x256xf32> to vector<32x256xf32>
    %143 = arith.mulf %86, %142 : vector<32x256xf32>
    %144 = vector.extract_strided_slice %89 {offsets = [13, 0], sizes = [1, 256], strides = [1, 1]} : vector<16x256xf32> to vector<1x256xf32>
    %145 = vector.broadcast %144 : vector<1x256xf32> to vector<32x256xf32>
    %146 = arith.mulf %87, %145 : vector<32x256xf32>
    %147 = arith.addf %143, %146 : vector<32x256xf32>
    %148 = vector.extract_strided_slice %89 {offsets = [14, 0], sizes = [1, 256], strides = [1, 1]} : vector<16x256xf32> to vector<1x256xf32>
    %149 = vector.broadcast %148 : vector<1x256xf32> to vector<32x256xf32>
    %150 = arith.mulf %88, %149 : vector<32x256xf32>
    %151 = arith.addf %147, %150 : vector<32x256xf32>
    %152 = vector.extract_strided_slice %89 {offsets = [15, 0], sizes = [1, 256], strides = [1, 1]} : vector<16x256xf32> to vector<1x256xf32>
    %153 = vector.broadcast %152 : vector<1x256xf32> to vector<32x256xf32>
    %154 = arith.mulf %86, %153 : vector<32x256xf32>
    %155 = arith.addf %151, %154 : vector<32x256xf32>
    %156 = arith.truncf %155 : vector<32x256xf32> to vector<32x256xbf16>
    %c96_29 = arith.constant 96 : index
    %c0_30 = arith.constant 0 : index
    %157 = vector.load %arg10[%c96_29, %c0_30] : memref<160x256xbf16, #tpu.memory_space<vmem>>, vector<32x256xbf16>
    tpu.vector_store %arg10[%c96_29, %c0_30], %156 {strides = array<i32>} : memref<160x256xbf16, #tpu.memory_space<vmem>>, vector<32x256xbf16>,
    %c0_31 = arith.constant 0 : index
    %c0_32 = arith.constant 0 : index
    %158 = vector.load %arg7[%c0_31, %c0_32] : memref<256x256xbf16, #tpu.memory_space<vmem>>, vector<256x256xbf16>
    %cst_33 = arith.constant dense<0.000000e+00> : vector<32x256xf32>
    %159 = tpu.matmul %85, %158, %cst_33 {dimension_numbers = #tpu.dot_dimension_numbers<[1], [0], [0], [1], [0, 0, 1, 1], [], []>} : vector<32x256xbf16>, vector<256x256xbf16>, vector<32x256xf32> -> vector<32x256xf32>
    %160 = arith.truncf %159 : vector<32x256xf32> to vector<32x256xbf16>
    %c128_34 = arith.constant 128 : index
    %c0_35 = arith.constant 0 : index
    %161 = vector.load %arg10[%c128_34, %c0_35] : memref<160x256xbf16, #tpu.memory_space<vmem>>, vector<32x256xbf16>
    tpu.vector_store %arg10[%c128_34, %c0_35], %160 {strides = array<i32>} : memref<160x256xbf16, #tpu.memory_space<vmem>>, vector<32x256xbf16>,
    %c0_36 = arith.constant 0 : index
    %c0_37 = arith.constant 0 : index
    %162 = vector.load %arg1[%c0_36, %c0_37] : memref<32x160xbf16, #tpu.memory_space<vmem>>, vector<32x160xbf16>
    %c0_38 = arith.constant 0 : index
    %c0_39 = arith.constant 0 : index
    %163 = vector.load %arg10[%c0_38, %c0_39] : memref<160x256xbf16, #tpu.memory_space<vmem>>, vector<160x256xbf16>
    %cst_40 = arith.constant dense<0.000000e+00> : vector<32x256xf32>
    %164 = tpu.matmul %162, %163, %cst_40 {dimension_numbers = #tpu.dot_dimension_numbers<[1], [0], [0], [1], [0, 0, 1, 1], [], []>} : vector<32x160xbf16>, vector<160x256xbf16>, vector<32x256xf32> -> vector<32x256xf32>
    %c0_41 = arith.constant 0 : index
    %c0_42 = arith.constant 0 : index
    %165 = vector.load %arg8[%c0_41, %c0_42] : memref<1x256xf32, #tpu.memory_space<vmem>>, vector<1x256xf32>
    %166 = vector.broadcast %165 : vector<1x256xf32> to vector<32x256xf32>
    %167 = arith.addf %164, %166 : vector<32x256xf32>
    %c0_43 = arith.constant 0 : index
    %c0_44 = arith.constant 0 : index
    %168 = vector.load %arg9[%c0_43, %c0_44] : memref<32x256xf32, #tpu.memory_space<vmem>>, vector<32x256xf32>
    tpu.vector_store %arg9[%c0_43, %c0_44], %167 {strides = array<i32>} : memref<32x256xf32, #tpu.memory_space<vmem>>, vector<32x256xf32>,
    return
  }
  func.func @transform_0(%arg0: i32) -> (i32, i32) {
    %c0_i32 = arith.constant 0 : i32
    %c0_i32_0 = arith.constant 0 : i32
    %c0_i32_1 = arith.constant 0 : i32
    return %c0_i32, %c0_i32_0 : i32, i32
  }
  func.func @transform_1(%arg0: i32) -> (i32, i32) {
    %c0_i32 = arith.constant 0 : i32
    %c0_i32_0 = arith.constant 0 : i32
    %c0_i32_1 = arith.constant 0 : i32
    return %c0_i32, %c0_i32_0 : i32, i32
  }
  func.func @transform_2(%arg0: i32) -> (i32, i32) {
    %c0_i32 = arith.constant 0 : i32
    %c0_i32_0 = arith.constant 0 : i32
    %c0_i32_1 = arith.constant 0 : i32
    return %c0_i32, %c0_i32_0 : i32, i32
  }
  func.func @transform_3(%arg0: i32) -> (i32, i32) {
    %c0_i32 = arith.constant 0 : i32
    %c0_i32_0 = arith.constant 0 : i32
    %c0_i32_1 = arith.constant 0 : i32
    return %c0_i32, %c0_i32_0 : i32, i32
  }
  func.func @transform_4(%arg0: i32) -> (i32, i32) {
    %c0_i32 = arith.constant 0 : i32
    %c0_i32_0 = arith.constant 0 : i32
    %c0_i32_1 = arith.constant 0 : i32
    return %c0_i32, %c0_i32_0 : i32, i32
  }
  func.func @transform_5(%arg0: i32) -> (i32, i32) {
    %c0_i32 = arith.constant 0 : i32
    %c0_i32_0 = arith.constant 0 : i32
    %c0_i32_1 = arith.constant 0 : i32
    return %c0_i32, %c0_i32_0 : i32, i32
  }
  func.func @transform_6(%arg0: i32) -> (i32, i32) {
    %c0_i32 = arith.constant 0 : i32
    %c0_i32_0 = arith.constant 0 : i32
    %c0_i32_1 = arith.constant 0 : i32
    return %c0_i32, %c0_i32_0 : i32, i32
  }
  func.func @transform_7(%arg0: i32) -> (i32, i32) {
    %c0_i32 = arith.constant 0 : i32
    %c0_i32_0 = arith.constant 0 : i32
    %c0_i32_1 = arith.constant 0 : i32
    return %c0_i32, %c0_i32_0 : i32, i32
  }
  func.func @transform_8(%arg0: i32) -> (i32, i32) {
    %c0_i32 = arith.constant 0 : i32
    %c0_i32_0 = arith.constant 0 : i32
    %c0_i32_1 = arith.constant 0 : i32
    return %c0_i32, %c0_i32_0 : i32, i32
  }
}

</mosaic_0001>

<llo_original>
// kernel: rgcn_forward.1
$region0: #{rgcn_forward.1}
  #allocation0 [shape = 'u32[]', space=smem, size = 0x4, offset = 0x4, fixed_abs, tag = 'smem constant byte address 0x4 - core index']
  #allocation1 [shape = 'u32[144,128]{1,0:T(1,128)}', space=vmem, size = 0x12000, scoped, tag = 'internal scratch']
  #allocation2 [shape = 'bf16[160,256]{1,0:T(16,128)(2,1)}', space=vmem, size = 0x14000, scoped, tag = 'scratch operand']
  %s0 = inlined_call_operand.vmem [shape: bf16[32,160], index: 0, kind: input, shape index: {}]
  %s1 = inlined_call_operand.vmem [shape: bf16[32,256], index: 1, kind: input, shape index: {}]
  %s2 = inlined_call_operand.vmem [shape: f32[16,256], index: 2, kind: input, shape index: {}]
  %s3 = inlined_call_operand.vmem [shape: bf16[256,256], index: 3, kind: input, shape index: {}]
  %s4 = inlined_call_operand.vmem [shape: f32[1,256], index: 4, kind: input, shape index: {}]
  %s5 = inlined_call_operand.vmem [shape: f32[16,256], index: 5, kind: input, shape index: {}]
  %s6 = inlined_call_operand.vmem [shape: bf16[256,256], index: 6, kind: input, shape index: {}]
  %s7 = inlined_call_operand.vmem [shape: f32[1,256], index: 7, kind: input, shape index: {}]
  %s8 = inlined_call_operand.hbm [shape: f32[32,256], index: 8, kind: output, shape index: {}]
  %s9 = sld [smem:[#allocation0]]
  $region42: #{rgcn_forward.1} parent=0
    _
  %s11 = ssub.s32 1, %s9
  %s12 = scalar_select 0, %s11, %s9
  $region1: #{rgcn_forward.1} parent=0
    #allocation3 [shape = 'u8[32768]{0}', space=vmem, size = 0x8000, scoped, tag = 'output window, operand 0, single buffered']
    #allocation4 [shape = 's32[1]{0}', space=sflag, size = 0x4, scoped, tag = 'scoped memory for rgcn_forward.1']
    %13 = vsyncpa [#allocation4], 0
    // Predicated region
    $region2: #{rgcn_forward.1} parent=1 // pred_check
      _
    $region3: #{rgcn_forward.1} parent=1 // pred_check_branch
      %15 = sbr.rel (0) target = $region5
    $region4: #{rgcn_forward.1} parent=1 // pred_region
      _
    $region5: #{rgcn_forward.1} parent=1 // pred_fallthru
      _
    // Predicated region
    $region6: #{rgcn_forward.1} parent=1 // pred_check
      _
    $region7: #{rgcn_forward.1} parent=1 // pred_check_branch
      %17 = sbr.rel (0) target = $region9
    $region8: #{rgcn_forward.1} parent=1 // pred_region
      _
    $region9: #{rgcn_forward.1} parent=1 // pred_fallthru
      _
    // Predicated region
    $region10: #{rgcn_forward.1} parent=1 // pred_check
      _
    $region11: #{rgcn_forward.1} parent=1 // pred_check_branch
      %19 = sbr.rel (0) target = $region13
    $region12: #{rgcn_forward.1} parent=1 // pred_region
      _
    $region13: #{rgcn_forward.1} parent=1 // pred_fallthru
      _
    // Predicated region
    $region14: #{rgcn_forward.1} parent=1 // pred_check
      _
    $region15: #{rgcn_forward.1} parent=1 // pred_check_branch
      %21 = sbr.rel (0) target = $region17
    $region16: #{rgcn_forward.1} parent=1 // pred_region
      _
    $region17: #{rgcn_forward.1} parent=1 // pred_fallthru
      _
    // Predicated region
    $region18: #{rgcn_forward.1} parent=1 // pred_check
      _
    $region19: #{rgcn_forward.1} parent=1 // pred_check_branch
      %23 = sbr.rel (0) target = $region21
    $region20: #{rgcn_forward.1} parent=1 // pred_region
      _
    $region21: #{rgcn_forward.1} parent=1 // pred_fallthru
      _
    // Predicated region
    $region22: #{rgcn_forward.1} parent=1 // pred_check
      _
    $region23: #{rgcn_forward.1} parent=1 // pred_check_branch
      %25 = sbr.rel (0) target = $region25
    $region24: #{rgcn_forward.1} parent=1 // pred_region
      _
    $region25: #{rgcn_forward.1} parent=1 // pred_fallthru
      _
    // Predicated region
    $region26: #{rgcn_forward.1} parent=1 // pred_check
      _
    $region27: #{rgcn_forward.1} parent=1 // pred_check_branch
      %27 = sbr.rel (0) target = $region29
    $region28: #{rgcn_forward.1} parent=1 // pred_region
      _
    $region29: #{rgcn_forward.1} parent=1 // pred_fallthru
      _
    // Predicated region
    $region30: #{rgcn_forward.1} parent=1 // pred_check
      _
    $region31: #{rgcn_forward.1} parent=1 // pred_check_branch
      %29 = sbr.rel (0) target = $region33
    $region32: #{rgcn_forward.1} parent=1 // pred_region
      _
    $region33: #{rgcn_forward.1} parent=1 // pred_fallthru
      _
    %v31 = vld [vmem:[%s1] sm:$0xff]
    %v32 = vld [vmem:[%s1 + $0x8] sm:$0xff]
    %v33 = vld [vmem:[%s1 + $0x10] sm:$0xff]
    %v34 = vld [vmem:[%s1 + $0x18] sm:$0xff]
    %v35 = vunpack.c.l.bf16 %v31
    %v36 = vunpack.c.h.bf16 %v31
    %v37 = vunpack.c.l.bf16 %v32
    %v38 = vunpack.c.h.bf16 %v32
    %v39 = vunpack.c.l.bf16 %v33
    %v40 = vunpack.c.h.bf16 %v33
    %v41 = vunpack.c.l.bf16 %v34
    %v42 = vunpack.c.h.bf16 %v34
    %43 = vrot.lane.b32.xlu0 %v35, 1
    %v44 = vpop.permute.xlu0 %43
    %45 = vrot.lane.b32.xlu0 %v37, 1
    %v46 = vpop.permute.xlu0 %45
    %47 = vrot.lane.b32.xlu0 %v39, 1
    %v48 = vpop.permute.xlu0 %47
    %49 = vrot.lane.b32.xlu0 %v41, 1
    %v50 = vpop.permute.xlu0 %49
    %51 = vrot.lane.b32.xlu0 %v36, 1
    %v52 = vpop.permute.xlu0 %51
    %53 = vrot.lane.b32.xlu0 %v38, 1
    %v54 = vpop.permute.xlu0 %53
    %55 = vrot.lane.b32.xlu0 %v40, 1
    %v56 = vpop.permute.xlu0 %55
    %57 = vrot.lane.b32.xlu0 %v42, 1
    %v58 = vpop.permute.xlu0 %57
    %v59 = vlaneseq
    %v60 = vand.u32 %v59, 127
    %vm61 = vcmp.lt.s32.totalorder %v60, 1
    %v62 = vsel %vm61, %v44, %v52
    %v63 = vsel %vm61, %v46, %v54
    %v64 = vsel %vm61, %v48, %v56
    %v65 = vsel %vm61, %v50, %v58
    %v66 = vsel %vm61, %v52, %v44
    %v67 = vsel %vm61, %v54, %v46
    %v68 = vsel %vm61, %v56, %v48
    %v69 = vsel %vm61, %v58, %v50
    %70 = vrot.lane.b32.xlu0 %v35, 127
    %v71 = vpop.permute.xlu0 %70
    %72 = vrot.lane.b32.xlu0 %v37, 127
    %v73 = vpop.permute.xlu0 %72
    %74 = vrot.lane.b32.xlu0 %v39, 127
    %v75 = vpop.permute.xlu0 %74
    %76 = vrot.lane.b32.xlu0 %v41, 127
    %v77 = vpop.permute.xlu0 %76
    %78 = vrot.lane.b32.xlu0 %v36, 127
    %v79 = vpop.permute.xlu0 %78
    %80 = vrot.lane.b32.xlu0 %v38, 127
    %v81 = vpop.permute.xlu0 %80
    %82 = vrot.lane.b32.xlu0 %v40, 127
    %v83 = vpop.permute.xlu0 %82
    %84 = vrot.lane.b32.xlu0 %v42, 127
    %v85 = vpop.permute.xlu0 %84
    %vm86 = vcmp.lt.s32.totalorder %v60, 127
    %v87 = vsel %vm86, %v71, %v79
    %v88 = vsel %vm86, %v73, %v81
    %v89 = vsel %vm86, %v75, %v83
    %v90 = vsel %vm86, %v77, %v85
    %v91 = vsel %vm86, %v79, %v71
    %v92 = vsel %vm86, %v81, %v73
    %v93 = vsel %vm86, %v83, %v75
    %v94 = vsel %vm86, %v85, %v77
    %v95 = vld [vmem:[%s2] sm:$0xff]
    %v96 = vld [vmem:[%s2 + $0x8] sm:$0xff]
    %v97 = vld [vmem:[%s2 + $0x10] sm:$0xff]
    %v98 = vld [vmem:[%s2 + $0x18] sm:$0xff]
    %v99 = vlaneseq
    %v100 = vshrl.u32 %v99, 7
    %v101 = vsub.s32 0, %v100
    %v102 = vrot.slane %v95, %v101
    %v103 = vlaneseq
    %v104 = vshrl.u32 %v103, 7
    %v105 = vsub.s32 0, %v104
    %v106 = vrot.slane %v96, %v105
    %v107 = vmul.f32 %v35, %v102
    %v108 = vmul.f32 %v36, %v106
    %v109 = vmul.f32 %v37, %v102
    %v110 = vmul.f32 %v38, %v106
    %v111 = vmul.f32 %v39, %v102
    %v112 = vmul.f32 %v40, %v106
    %v113 = vmul.f32 %v41, %v102
    %v114 = vmul.f32 %v42, %v106
    %v115 = vlaneseq
    %v116 = vshrl.u32 %v115, 7
    %v117 = vsub.s32 1, %v116
    %v118 = vrot.slane %v95, %v117
    %v119 = vlaneseq
    %v120 = vshrl.u32 %v119, 7
    %v121 = vsub.s32 1, %v120
    %v122 = vrot.slane %v96, %v121
    %v123 = vmul.f32 %v66, %v118
    %v124 = vmul.f32 %v62, %v122
    %v125 = vmul.f32 %v67, %v118
    %v126 = vmul.f32 %v63, %v122
    %v127 = vmul.f32 %v68, %v118
    %v128 = vmul.f32 %v64, %v122
    %v129 = vmul.f32 %v69, %v118
    %v130 = vmul.f32 %v65, %v122
    %v131 = vadd.f32 %v107, %v123
    %v132 = vadd.f32 %v108, %v124
    %v133 = vadd.f32 %v109, %v125
    %v134 = vadd.f32 %v110, %v126
    %v135 = vadd.f32 %v111, %v127
    %v136 = vadd.f32 %v112, %v128
    %v137 = vadd.f32 %v113, %v129
    %v138 = vadd.f32 %v114, %v130
    %v139 = vlaneseq
    %v140 = vshrl.u32 %v139, 7
    %v141 = vsub.s32 2, %v140
    %v142 = vrot.slane %v95, %v141
    %v143 = vlaneseq
    %v144 = vshrl.u32 %v143, 7
    %v145 = vsub.s32 2, %v144
    %v146 = vrot.slane %v96, %v145
    %v147 = vmul.f32 %v87, %v142
    %v148 = vmul.f32 %v91, %v146
    %v149 = vmul.f32 %v88, %v142
    %v150 = vmul.f32 %v92, %v146
    %v151 = vmul.f32 %v89, %v142
    %v152 = vmul.f32 %v93, %v146
    %v153 = vmul.f32 %v90, %v142
    %v154 = vmul.f32 %v94, %v146
    %v155 = vadd.f32 %v131, %v147
    %v156 = vadd.f32 %v132, %v148
    %v157 = vadd.f32 %v133, %v149
    %v158 = vadd.f32 %v134, %v150
    %v159 = vadd.f32 %v135, %v151
    %v160 = vadd.f32 %v136, %v152
    %v161 = vadd.f32 %v137, %v153
    %v162 = vadd.f32 %v138, %v154
    %v163 = vlaneseq
    %v164 = vshrl.u32 %v163, 7
    %v165 = vsub.s32 3, %v164
    %v166 = vrot.slane %v95, %v165
    %v167 = vlaneseq
    %v168 = vshrl.u32 %v167, 7
    %v169 = vsub.s32 3, %v168
    %v170 = vrot.slane %v96, %v169
    %v171 = vmul.f32 %v35, %v166
    %v172 = vmul.f32 %v36, %v170
    %v173 = vmul.f32 %v37, %v166
    %v174 = vmul.f32 %v38, %v170
    %v175 = vmul.f32 %v39, %v166
    %v176 = vmul.f32 %v40, %v170
    %v177 = vmul.f32 %v41, %v166
    %v178 = vmul.f32 %v42, %v170
    %v179 = vadd.f32 %v155, %v171
    %v180 = vadd.f32 %v156, %v172
    %v181 = vadd.f32 %v157, %v173
    %v182 = vadd.f32 %v158, %v174
    %v183 = vadd.f32 %v159, %v175
    %v184 = vadd.f32 %v160, %v176
    %v185 = vadd.f32 %v161, %v177
    %v186 = vadd.f32 %v162, %v178
    %v187 = vpack.c.bf16 %v181, %v179
    %v188 = vpack.c.bf16 %v182, %v180
    %v189 = vpack.c.bf16 %v185, %v183
    %v190 = vpack.c.bf16 %v186, %v184
    %191 = vst [vmem:[#allocation2] sm:$0xff] %v187
    %192 = vst [vmem:[#allocation2 + $0x8] sm:$0xff] %v188
    %193 = vst [vmem:[#allocation2 + $0x10] sm:$0xff] %v189
    %194 = vst [vmem:[#allocation2 + $0x18] sm:$0xff] %v190
    %v195 = vlaneseq
    %v196 = vshrl.u32 %v195, 7
    %v197 = vsub.s32 4, %v196
    %v198 = vrot.slane %v95, %v197
    %v199 = vlaneseq
    %v200 = vshrl.u32 %v199, 7
    %v201 = vsub.s32 4, %v200
    %v202 = vrot.slane %v96, %v201
    %v203 = vmul.f32 %v35, %v198
    %v204 = vmul.f32 %v36, %v202
    %v205 = vmul.f32 %v37, %v198
    %v206 = vmul.f32 %v38, %v202
    %v207 = vmul.f32 %v39, %v198
    %v208 = vmul.f32 %v40, %v202
    %v209 = vmul.f32 %v41, %v198
    %v210 = vmul.f32 %v42, %v202
    %v211 = vlaneseq
    %v212 = vshrl.u32 %v211, 7
    %v213 = vsub.s32 5, %v212
    %v214 = vrot.slane %v95, %v213
    %v215 = vlaneseq
    %v216 = vshrl.u32 %v215, 7
    %v217 = vsub.s32 5, %v216
    %v218 = vrot.slane %v96, %v217
    %v219 = vmul.f32 %v66, %v214
    %v220 = vmul.f32 %v62, %v218
    %v221 = vmul.f32 %v67, %v214
    %v222 = vmul.f32 %v63, %v218
    %v223 = vmul.f32 %v68, %v214
    %v224 = vmul.f32 %v64, %v218
    %v225 = vmul.f32 %v69, %v214
    %v226 = vmul.f32 %v65, %v218
    %v227 = vadd.f32 %v203, %v219
    %v228 = vadd.f32 %v204, %v220
    %v229 = vadd.f32 %v205, %v221
    %v230 = vadd.f32 %v206, %v222
    %v231 = vadd.f32 %v207, %v223
    %v232 = vadd.f32 %v208, %v224
    %v233 = vadd.f32 %v209, %v225
    %v234 = vadd.f32 %v210, %v226
    %v235 = vlaneseq
    %v236 = vshrl.u32 %v235, 7
    %v237 = vsub.s32 6, %v236
    %v238 = vrot.slane %v95, %v237
    %v239 = vlaneseq
    %v240 = vshrl.u32 %v239, 7
    %v241 = vsub.s32 6, %v240
    %v242 = vrot.slane %v96, %v241
    %v243 = vmul.f32 %v87, %v238
    %v244 = vmul.f32 %v91, %v242
    %v245 = vmul.f32 %v88, %v238
    %v246 = vmul.f32 %v92, %v242
    %v247 = vmul.f32 %v89, %v238
    %v248 = vmul.f32 %v93, %v242
    %v249 = vmul.f32 %v90, %v238
    %v250 = vmul.f32 %v94, %v242
    %v251 = vadd.f32 %v227, %v243
    %v252 = vadd.f32 %v228, %v244
    %v253 = vadd.f32 %v229, %v245
    %v254 = vadd.f32 %v230, %v246
    %v255 = vadd.f32 %v231, %v247
    %v256 = vadd.f32 %v232, %v248
    %v257 = vadd.f32 %v233, %v249
    %v258 = vadd.f32 %v234, %v250
    %v259 = vlaneseq
    %v260 = vshrl.u32 %v259, 7
    %v261 = vsub.s32 7, %v260
    %v262 = vrot.slane %v95, %v261
    %v263 = vlaneseq
    %v264 = vshrl.u32 %v263, 7
    %v265 = vsub.s32 7, %v264
    %v266 = vrot.slane %v96, %v265
    %v267 = vmul.f32 %v35, %v262
    %v268 = vmul.f32 %v36, %v266
    %v269 = vmul.f32 %v37, %v262
    %v270 = vmul.f32 %v38, %v266
    %v271 = vmul.f32 %v39, %v262
    %v272 = vmul.f32 %v40, %v266
    %v273 = vmul.f32 %v41, %v262
    %v274 = vmul.f32 %v42, %v266
    %v275 = vadd.f32 %v251, %v267
    %v276 = vadd.f32 %v252, %v268
    %v277 = vadd.f32 %v253, %v269
    %v278 = vadd.f32 %v254, %v270
    %v279 = vadd.f32 %v255, %v271
    %v280 = vadd.f32 %v256, %v272
    %v281 = vadd.f32 %v257, %v273
    %v282 = vadd.f32 %v258, %v274
    %v283 = vpack.c.bf16 %v277, %v275
    %v284 = vpack.c.bf16 %v278, %v276
    %v285 = vpack.c.bf16 %v281, %v279
    %v286 = vpack.c.bf16 %v282, %v280
    %287 = vst [vmem:[#allocation2 + $0x20] sm:$0xff] %v283
    %288 = vst [vmem:[#allocation2 + $0x28] sm:$0xff] %v284
    %289 = vst [vmem:[#allocation2 + $0x30] sm:$0xff] %v285
    %290 = vst [vmem:[#allocation2 + $0x38] sm:$0xff] %v286
    %v291 = vlaneseq
    %v292 = vshrl.u32 %v291, 7
    %v293 = vsub.s32 0, %v292
    %v294 = vrot.slane %v97, %v293
    %v295 = vlaneseq
    %v296 = vshrl.u32 %v295, 7
    %v297 = vsub.s32 0, %v296
    %v298 = vrot.slane %v98, %v297
    %v299 = vmul.f32 %v35, %v294
    %v300 = vmul.f32 %v36, %v298
    %v301 = vmul.f32 %v37, %v294
    %v302 = vmul.f32 %v38, %v298
    %v303 = vmul.f32 %v39, %v294
    %v304 = vmul.f32 %v40, %v298
    %v305 = vmul.f32 %v41, %v294
    %v306 = vmul.f32 %v42, %v298
    %v307 = vlaneseq
    %v308 = vshrl.u32 %v307, 7
    %v309 = vsub.s32 1, %v308
    %v310 = vrot.slane %v97, %v309
    %v311 = vlaneseq
    %v312 = vshrl.u32 %v311, 7
    %v313 = vsub.s32 1, %v312
    %v314 = vrot.slane %v98, %v313
    %v315 = vmul.f32 %v66, %v310
    %v316 = vmul.f32 %v62, %v314
    %v317 = vmul.f32 %v67, %v310
    %v318 = vmul.f32 %v63, %v314
    %v319 = vmul.f32 %v68, %v310
    %v320 = vmul.f32 %v64, %v314
    %v321 = vmul.f32 %v69, %v310
    %v322 = vmul.f32 %v65, %v314
    %v323 = vadd.f32 %v299, %v315
    %v324 = vadd.f32 %v300, %v316
    %v325 = vadd.f32 %v301, %v317
    %v326 = vadd.f32 %v302, %v318
    %v327 = vadd.f32 %v303, %v319
    %v328 = vadd.f32 %v304, %v320
    %v329 = vadd.f32 %v305, %v321
    %v330 = vadd.f32 %v306, %v322
    %v331 = vlaneseq
    %v332 = vshrl.u32 %v331, 7
    %v333 = vsub.s32 2, %v332
    %v334 = vrot.slane %v97, %v333
    %v335 = vlaneseq
    %v336 = vshrl.u32 %v335, 7
    %v337 = vsub.s32 2, %v336
    %v338 = vrot.slane %v98, %v337
    %v339 = vmul.f32 %v87, %v334
    %v340 = vmul.f32 %v91, %v338
    %v341 = vmul.f32 %v88, %v334
    %v342 = vmul.f32 %v92, %v338
    %v343 = vmul.f32 %v89, %v334
    %v344 = vmul.f32 %v93, %v338
    %v345 = vmul.f32 %v90, %v334
    %v346 = vmul.f32 %v94, %v338
    %v347 = vadd.f32 %v323, %v339
    %v348 = vadd.f32 %v324, %v340
    %v349 = vadd.f32 %v325, %v341
    %v350 = vadd.f32 %v326, %v342
    %v351 = vadd.f32 %v327, %v343
    %v352 = vadd.f32 %v328, %v344
    %v353 = vadd.f32 %v329, %v345
    %v354 = vadd.f32 %v330, %v346
    %v355 = vlaneseq
    %v356 = vshrl.u32 %v355, 7
    %v357 = vsub.s32 3, %v356
    %v358 = vrot.slane %v97, %v357
    %v359 = vlaneseq
    %v360 = vshrl.u32 %v359, 7
    %v361 = vsub.s32 3, %v360
    %v362 = vrot.slane %v98, %v361
    %v363 = vmul.f32 %v35, %v358
    %v364 = vmul.f32 %v36, %v362
    %v365 = vmul.f32 %v37, %v358
    %v366 = vmul.f32 %v38, %v362
    %v367 = vmul.f32 %v39, %v358
    %v368 = vmul.f32 %v40, %v362
    %v369 = vmul.f32 %v41, %v358
    %v370 = vmul.f32 %v42, %v362
    %v371 = vadd.f32 %v347, %v363
    %v372 = vadd.f32 %v348, %v364
    %v373 = vadd.f32 %v349, %v365
    %v374 = vadd.f32 %v350, %v366
    %v375 = vadd.f32 %v351, %v367
    %v376 = vadd.f32 %v352, %v368
    %v377 = vadd.f32 %v353, %v369
    %v378 = vadd.f32 %v354, %v370
    %v379 = vpack.c.bf16 %v373, %v371
    %v380 = vpack.c.bf16 %v374, %v372
    %v381 = vpack.c.bf16 %v377, %v375
    %v382 = vpack.c.bf16 %v378, %v376
    %383 = vst [vmem:[#allocation2 + $0x40] sm:$0xff] %v379
    %384 = vst [vmem:[#allocation2 + $0x48] sm:$0xff] %v380
    %385 = vst [vmem:[#allocation2 + $0x50] sm:$0xff] %v381
    %386 = vst [vmem:[#allocation2 + $0x58] sm:$0xff] %v382
    %v387 = vlaneseq
    %v388 = vshrl.u32 %v387, 7
    %v389 = vsub.s32 4, %v388
    %v390 = vrot.slane %v97, %v389
    %v391 = vlaneseq
    %v392 = vshrl.u32 %v391, 7
    %v393 = vsub.s32 4, %v392
    %v394 = vrot.slane %v98, %v393
    %v395 = vmul.f32 %v35, %v390
    %v396 = vmul.f32 %v36, %v394
    %v397 = vmul.f32 %v37, %v390
    %v398 = vmul.f32 %v38, %v394
    %v399 = vmul.f32 %v39, %v390
    %v400 = vmul.f32 %v40, %v394
    %v401 = vmul.f32 %v41, %v390
    %v402 = vmul.f32 %v42, %v394
    %v403 = vlaneseq
    %v404 = vshrl.u32 %v403, 7
    %v405 = vsub.s32 5, %v404
    %v406 = vrot.slane %v97, %v405
    %v407 = vlaneseq
    %v408 = vshrl.u32 %v407, 7
    %v409 = vsub.s32 5, %v408
    %v410 = vrot.slane %v98, %v409
    %v411 = vmul.f32 %v66, %v406
    %v412 = vmul.f32 %v62, %v410
    %v413 = vmul.f32 %v67, %v406
    %v414 = vmul.f32 %v63, %v410
    %v415 = vmul.f32 %v68, %v406
    %v416 = vmul.f32 %v64, %v410
    %v417 = vmul.f32 %v69, %v406
    %v418 = vmul.f32 %v65, %v410
    %v419 = vadd.f32 %v395, %v411
    %v420 = vadd.f32 %v396, %v412
    %v421 = vadd.f32 %v397, %v413
    %v422 = vadd.f32 %v398, %v414
    %v423 = vadd.f32 %v399, %v415
    %v424 = vadd.f32 %v400, %v416
    %v425 = vadd.f32 %v401, %v417
    %v426 = vadd.f32 %v402, %v418
    %v427 = vlaneseq
    %v428 = vshrl.u32 %v427, 7
    %v429 = vsub.s32 6, %v428
    %v430 = vrot.slane %v97, %v429
    %v431 = vlaneseq
    %v432 = vshrl.u32 %v431, 7
    %v433 = vsub.s32 6, %v432
    %v434 = vrot.slane %v98, %v433
    %v435 = vmul.f32 %v87, %v430
    %v436 = vmul.f32 %v91, %v434
    %v437 = vmul.f32 %v88, %v430
    %v438 = vmul.f32 %v92, %v434
    %v439 = vmul.f32 %v89, %v430
    %v440 = vmul.f32 %v93, %v434
    %v441 = vmul.f32 %v90, %v430
    %v442 = vmul.f32 %v94, %v434
    %v443 = vadd.f32 %v419, %v435
    %v444 = vadd.f32 %v420, %v436
    %v445 = vadd.f32 %v421, %v437
    %v446 = vadd.f32 %v422, %v438
    %v447 = vadd.f32 %v423, %v439
    %v448 = vadd.f32 %v424, %v440
    %v449 = vadd.f32 %v425, %v441
    %v450 = vadd.f32 %v426, %v442
    %v451 = vlaneseq
    %v452 = vshrl.u32 %v451, 7
    %v453 = vsub.s32 7, %v452
    %v454 = vrot.slane %v97, %v453
    %v455 = vlaneseq
    %v456 = vshrl.u32 %v455, 7
    %v457 = vsub.s32 7, %v456
    %v458 = vrot.slane %v98, %v457
    %v459 = vmul.f32 %v35, %v454
    %v460 = vmul.f32 %v36, %v458
    %v461 = vmul.f32 %v37, %v454
    %v462 = vmul.f32 %v38, %v458
    %v463 = vmul.f32 %v39, %v454
    %v464 = vmul.f32 %v40, %v458
    %v465 = vmul.f32 %v41, %v454
    %v466 = vmul.f32 %v42, %v458
    %v467 = vadd.f32 %v443, %v459
    %v468 = vadd.f32 %v444, %v460
    %v469 = vadd.f32 %v445, %v461
    %v470 = vadd.f32 %v446, %v462
    %v471 = vadd.f32 %v447, %v463
    %v472 = vadd.f32 %v448, %v464
    %v473 = vadd.f32 %v449, %v465
    %v474 = vadd.f32 %v450, %v466
    %v475 = vpack.c.bf16 %v469, %v467
    %v476 = vpack.c.bf16 %v470, %v468
    %v477 = vpack.c.bf16 %v473, %v471
    %v478 = vpack.c.bf16 %v474, %v472
    %479 = vst [vmem:[#allocation2 + $0x60] sm:$0xff] %v475
    %480 = vst [vmem:[#allocation2 + $0x68] sm:$0xff] %v476
    %481 = vst [vmem:[#allocation2 + $0x70] sm:$0xff] %v477
    %482 = vst [vmem:[#allocation2 + $0x78] sm:$0xff] %v478
    %v483 = vld [vmem:[%s3] sm:$0xff]
    %v484 = vld [vmem:[%s3 + $0x8] sm:$0xff]
    %v485 = vld [vmem:[%s3 + $0x10] sm:$0xff]
    %v486 = vld [vmem:[%s3 + $0x18] sm:$0xff]
    %v487 = vld [vmem:[%s3 + $0x20] sm:$0xff]
    %v488 = vld [vmem:[%s3 + $0x28] sm:$0xff]
    %v489 = vld [vmem:[%s3 + $0x30] sm:$0xff]
    %v490 = vld [vmem:[%s3 + $0x38] sm:$0xff]
    %v491 = vld [vmem:[%s3 + $0x40] sm:$0xff]
    %v492 = vld [vmem:[%s3 + $0x48] sm:$0xff]
    %v493 = vld [vmem:[%s3 + $0x50] sm:$0xff]
    %v494 = vld [vmem:[%s3 + $0x58] sm:$0xff]
    %v495 = vld [vmem:[%s3 + $0x60] sm:$0xff]
    %v496 = vld [vmem:[%s3 + $0x68] sm:$0xff]
    %v497 = vld [vmem:[%s3 + $0x70] sm:$0xff]
    %v498 = vld [vmem:[%s3 + $0x78] sm:$0xff]
    %v499 = vld [vmem:[%s3 + $0x80] sm:$0xff]
    %v500 = vld [vmem:[%s3 + $0x88] sm:$0xff]
    %v501 = vld [vmem:[%s3 + $0x90] sm:$0xff]
    %v502 = vld [vmem:[%s3 + $0x98] sm:$0xff]
    %v503 = vld [vmem:[%s3 + $0xa0] sm:$0xff]
    %v504 = vld [vmem:[%s3 + $0xa8] sm:$0xff]
    %v505 = vld [vmem:[%s3 + $0xb0] sm:$0xff]
    %v506 = vld [vmem:[%s3 + $0xb8] sm:$0xff]
    %v507 = vld [vmem:[%s3 + $0xc0] sm:$0xff]
    %v508 = vld [vmem:[%s3 + $0xc8] sm:$0xff]
    %v509 = vld [vmem:[%s3 + $0xd0] sm:$0xff]
    %v510 = vld [vmem:[%s3 + $0xd8] sm:$0xff]
    %v511 = vld [vmem:[%s3 + $0xe0] sm:$0xff]
    %v512 = vld [vmem:[%s3 + $0xe8] sm:$0xff]
    %v513 = vld [vmem:[%s3 + $0xf0] sm:$0xff]
    %v514 = vld [vmem:[%s3 + $0xf8] sm:$0xff]
    %v519 = vunpack.c.l.b16 %v31
    %v520 = vunpack.c.h.b16 %v31
    %v521 = vunpack.c.l.b16 %v32
    %v522 = vunpack.c.h.b16 %v32
    %v523 = vunpack.c.l.b16 %v33
    %v524 = vunpack.c.h.b16 %v33
    %v525 = vunpack.c.l.b16 %v34
    %v526 = vunpack.c.h.b16 %v34
    %v527 = vpack.c.b16 %v521, %v519
    %v528 = vpack.c.b16 %v522, %v520
    %v529 = vpack.c.b16 %v525, %v523
    %v530 = vpack.c.b16 %v526, %v524
    %v567 = vunpack.c.l.b16 %v483
    %v568 = vunpack.c.h.b16 %v483
    %v569 = vunpack.c.l.b16 %v484
    %v570 = vunpack.c.h.b16 %v484
    %v571 = vunpack.c.l.b16 %v485
    %v572 = vunpack.c.h.b16 %v485
    %v573 = vunpack.c.l.b16 %v486
    %v574 = vunpack.c.h.b16 %v486
    %v575 = vunpack.c.l.b16 %v487
    %v576 = vunpack.c.h.b16 %v487
    %v577 = vunpack.c.l.b16 %v488
    %v578 = vunpack.c.h.b16 %v488
    %v579 = vunpack.c.l.b16 %v489
    %v580 = vunpack.c.h.b16 %v489
    %v581 = vunpack.c.l.b16 %v490
    %v582 = vunpack.c.h.b16 %v490
    %v583 = vunpack.c.l.b16 %v491
    %v584 = vunpack.c.h.b16 %v491
    %v585 = vunpack.c.l.b16 %v492
    %v586 = vunpack.c.h.b16 %v492
    %v587 = vunpack.c.l.b16 %v493
    %v588 = vunpack.c.h.b16 %v493
    %v589 = vunpack.c.l.b16 %v494
    %v590 = vunpack.c.h.b16 %v494
    %v591 = vunpack.c.l.b16 %v495
    %v592 = vunpack.c.h.b16 %v495
    %v593 = vunpack.c.l.b16 %v496
    %v594 = vunpack.c.h.b16 %v496
    %v595 = vunpack.c.l.b16 %v497
    %v596 = vunpack.c.h.b16 %v497
    %v597 = vunpack.c.l.b16 %v498
    %v598 = vunpack.c.h.b16 %v498
    %v599 = vunpack.c.l.b16 %v499
    %v600 = vunpack.c.h.b16 %v499
    %v601 = vunpack.c.l.b16 %v500
    %v602 = vunpack.c.h.b16 %v500
    %v603 = vunpack.c.l.b16 %v501
    %v604 = vunpack.c.h.b16 %v501
    %v605 = vunpack.c.l.b16 %v502
    %v606 = vunpack.c.h.b16 %v502
    %v607 = vunpack.c.l.b16 %v503
    %v608 = vunpack.c.h.b16 %v503
    %v609 = vunpack.c.l.b16 %v504
    %v610 = vunpack.c.h.b16 %v504
    %v611 = vunpack.c.l.b16 %v505
    %v612 = vunpack.c.h.b16 %v505
    %v613 = vunpack.c.l.b16 %v506
    %v614 = vunpack.c.h.b16 %v506
    %v615 = vunpack.c.l.b16 %v507
    %v616 = vunpack.c.h.b16 %v507
    %v617 = vunpack.c.l.b16 %v508
    %v618 = vunpack.c.h.b16 %v508
    %v619 = vunpack.c.l.b16 %v509
    %v620 = vunpack.c.h.b16 %v509
    %v621 = vunpack.c.l.b16 %v510
    %v622 = vunpack.c.h.b16 %v510
    %v623 = vunpack.c.l.b16 %v511
    %v624 = vunpack.c.h.b16 %v511
    %v625 = vunpack.c.l.b16 %v512
    %v626 = vunpack.c.h.b16 %v512
    %v627 = vunpack.c.l.b16 %v513
    %v628 = vunpack.c.h.b16 %v513
    %v629 = vunpack.c.l.b16 %v514
    %v630 = vunpack.c.h.b16 %v514
    %v631 = vpack.c.b16 %v569, %v567
    %v632 = vpack.c.b16 %v570, %v568
    %v633 = vpack.c.b16 %v573, %v571
    %v634 = vpack.c.b16 %v574, %v572
    %v635 = vpack.c.b16 %v577, %v575
    %v636 = vpack.c.b16 %v578, %v576
    %v637 = vpack.c.b16 %v581, %v579
    %v638 = vpack.c.b16 %v582, %v580
    %v639 = vpack.c.b16 %v585, %v583
    %v640 = vpack.c.b16 %v586, %v584
    %v641 = vpack.c.b16 %v589, %v587
    %v642 = vpack.c.b16 %v590, %v588
    %v643 = vpack.c.b16 %v593, %v591
    %v644 = vpack.c.b16 %v594, %v592
    %v645 = vpack.c.b16 %v597, %v595
    %v646 = vpack.c.b16 %v598, %v596
    %v647 = vpack.c.b16 %v601, %v599
    %v648 = vpack.c.b16 %v602, %v600
    %v649 = vpack.c.b16 %v605, %v603
    %v650 = vpack.c.b16 %v606, %v604
    %v651 = vpack.c.b16 %v609, %v607
    %v652 = vpack.c.b16 %v610, %v608
    %v653 = vpack.c.b16 %v613, %v611
    %v654 = vpack.c.b16 %v614, %v612
    %v655 = vpack.c.b16 %v617, %v615
    %v656 = vpack.c.b16 %v618, %v616
    %v657 = vpack.c.b16 %v621, %v619
    %v658 = vpack.c.b16 %v622, %v620
    %v659 = vpack.c.b16 %v625, %v623
    %v660 = vpack.c.b16 %v626, %v624
    %v661 = vpack.c.b16 %v629, %v627
    %v662 = vpack.c.b16 %v630, %v628
    %695 = vmatprep.subr.bf16.mxu0 %v632
    %696 = vmatpush1.bf16.msra.mxu0 %v631
    %697 = vmatprep.subr.bf16.mxu0 %v634
    %698 = vmatpush1.bf16.msra.mxu0 %v633
    %699 = vmatprep.subr.bf16.mxu0 %v636
    %700 = vmatpush1.bf16.msra.mxu0 %v635
    %701 = vmatprep.subr.bf16.mxu0 %v638
    %702 = vmatpush1.bf16.msra.mxu0 %v637
    %703 = vmatprep.subr.bf16.mxu0 %v640
    %704 = vmatpush1.bf16.msra.mxu0 %v639
    %705 = vmatprep.subr.bf16.mxu0 %v642
    %706 = vmatpush1.bf16.msra.mxu0 %v641
    %707 = vmatprep.subr.bf16.mxu0 %v644
    %708 = vmatpush1.bf16.msra.mxu0 %v643
    %709 = vmatprep.subr.bf16.mxu0 %v646
    %710 = vmatpush1.bf16.msra.mxu0 %v645
    %711 = vmatprep.subr.bf16.mxu0 %v648
    %712 = vmatpush1.bf16.msra.mxu0 %v647
    %713 = vmatprep.subr.bf16.mxu0 %v650
    %714 = vmatpush1.bf16.msra.mxu0 %v649
    %715 = vmatprep.subr.bf16.mxu0 %v652
    %716 = vmatpush1.bf16.msra.mxu0 %v651
    %717 = vmatprep.subr.bf16.mxu0 %v654
    %718 = vmatpush1.bf16.msra.mxu0 %v653
    %719 = vmatprep.subr.bf16.mxu0 %v656
    %720 = vmatpush1.bf16.msra.mxu0 %v655
    %721 = vmatprep.subr.bf16.mxu0 %v658
    %722 = vmatpush1.bf16.msra.mxu0 %v657
    %723 = vmatprep.subr.bf16.mxu0 %v660
    %724 = vmatpush1.bf16.msra.mxu0 %v659
    %725 = vmatprep.subr.bf16.mxu0 %v662
    %726 = vmatpush1.bf16.msra.mxu0 %v661
    %727 = vmatprep.mubr.bf16.mxu0 %v528
    %728 = vmatmul.mubr.bf16.gmra.mrb[0].mxu0 %v527
    %v729 = vpop.f32.mrb[0].mxu0
    %v730 = vadd.f32 0.0, %v729
    %v731 = vpop.f32.mrb[0].mxu0
    %v732 = vadd.f32 0.0, %v731
    %v733 = vpop.f32.mrb[0].mxu0
    %v734 = vadd.f32 0.0, %v733
    %v735 = vpop.f32.mrb[0].mxu0
    %v736 = vadd.f32 0.0, %v735
    %737 = vmatprep.mubr.bf16.mxu0 %v530
    %738 = vmatmul.mubr.bf16.gmra.mrb[0].mxu0 %v529
    %v739 = vpop.f32.mrb[0].mxu0
    %v740 = vadd.f32 0.0, %v739
    %v741 = vpop.f32.mrb[0].mxu0
    %v742 = vadd.f32 0.0, %v741
    %v743 = vpop.f32.mrb[0].mxu0
    %v744 = vadd.f32 0.0, %v743
    %v745 = vpop.f32.mrb[0].mxu0
    %v746 = vadd.f32 0.0, %v745
    %747 = vdwg.mxu0
    %v748 = vpack.c.bf16 %v734, %v730
    %v749 = vpack.c.bf16 %v736, %v732
    %v750 = vpack.c.bf16 %v744, %v740
    %v751 = vpack.c.bf16 %v746, %v742
    %752 = vst [vmem:[#allocation2 + $0x80] sm:$0xff] %v748
    %753 = vst [vmem:[#allocation2 + $0x88] sm:$0xff] %v749
    %754 = vst [vmem:[#allocation2 + $0x90] sm:$0xff] %v750
    %755 = vst [vmem:[#allocation2 + $0x98] sm:$0xff] %v751
    %v756 = vld [vmem:[%s0] sm:$0xff]
    %v757 = vld [vmem:[%s0 + $0x8] sm:$0xff]
    %v758 = vld [vmem:[%s0 + $0x10] sm:$0xff]
    %v759 = vld [vmem:[%s0 + $0x18] sm:$0xff]
    %v760 = vld [vmem:[#allocation2] sm:$0xff]
    %v761 = vld [vmem:[#allocation2 + $0x8] sm:$0xff]
    %v762 = vld [vmem:[#allocation2 + $0x10] sm:$0xff]
    %v763 = vld [vmem:[#allocation2 + $0x18] sm:$0xff]
    %v764 = vld [vmem:[#allocation2 + $0x20] sm:$0xff]
    %v765 = vld [vmem:[#allocation2 + $0x28] sm:$0xff]
    %v766 = vld [vmem:[#allocation2 + $0x30] sm:$0xff]
    %v767 = vld [vmem:[#allocation2 + $0x38] sm:$0xff]
    %v768 = vld [vmem:[#allocation2 + $0x40] sm:$0xff]
    %v769 = vld [vmem:[#allocation2 + $0x48] sm:$0xff]
    %v770 = vld [vmem:[#allocation2 + $0x50] sm:$0xff]
    %v771 = vld [vmem:[#allocation2 + $0x58] sm:$0xff]
    %v772 = vld [vmem:[#allocation2 + $0x60] sm:$0xff]
    %v773 = vld [vmem:[#allocation2 + $0x68] sm:$0xff]
    %v774 = vld [vmem:[#allocation2 + $0x70] sm:$0xff]
    %v775 = vld [vmem:[#allocation2 + $0x78] sm:$0xff]
    %v776 = vld [vmem:[#allocation2 + $0x80] sm:$0xff]
    %v777 = vld [vmem:[#allocation2 + $0x88] sm:$0xff]
    %v778 = vld [vmem:[#allocation2 + $0x90] sm:$0xff]
    %v779 = vld [vmem:[#allocation2 + $0x98] sm:$0xff]
    %v780 = vld [vmem:[%s4] sm:$0x3]
    %v782 = vlaneseq
    %v783 = vshrl.u32 %v782, 7
    %v784 = vsub.s32 0, %v783
    %v785 = vrot.slane %v780, %v784
    %v786 = vlaneseq
    %v787 = vshrl.u32 %v786, 7
    %v788 = vsub.s32 1, %v787
    %v789 = vrot.slane %v780, %v788
    %v796 = vunpack.c.l.b16 %v756
    %v797 = vunpack.c.h.b16 %v756
    %v798 = vunpack.c.l.b16 %v757
    %v799 = vunpack.c.h.b16 %v757
    %v800 = vunpack.c.l.b16 %v758
    %v801 = vunpack.c.h.b16 %v758
    %v802 = vunpack.c.l.b16 %v759
    %v803 = vunpack.c.h.b16 %v759
    %v804 = vpack.c.b16 %v798, %v796
    %v805 = vpack.c.b16 %v799, %v797
    %v806 = vpack.c.b16 %v802, %v800
    %v807 = vpack.c.b16 %v803, %v801
    %vm810 = vcmask 261120
    %v812 = vsel %vm810, %v805, 0
    %v815 = vsel %vm810, %v807, 0
    %817 = vmatprep.subr.bf16.mxu0 %v761
    %818 = vmatpush1.bf16.msra.mxu0 %v760
    %819 = vmatprep.subr.bf16.mxu0 %v763
    %820 = vmatpush1.bf16.msra.mxu0 %v762
    %821 = vmatprep.subr.bf16.mxu0 %v765
    %822 = vmatpush1.bf16.msra.mxu0 %v764
    %823 = vmatprep.subr.bf16.mxu0 %v767
    %824 = vmatpush1.bf16.msra.mxu0 %v766
    %825 = vmatprep.subr.bf16.mxu0 %v769
    %826 = vmatpush1.bf16.msra.mxu0 %v768
    %827 = vmatprep.subr.bf16.mxu0 %v771
    %828 = vmatpush1.bf16.msra.mxu0 %v770
    %829 = vmatprep.subr.bf16.mxu0 %v773
    %830 = vmatpush1.bf16.msra.mxu0 %v772
    %831 = vmatprep.subr.bf16.mxu0 %v775
    %832 = vmatpush1.bf16.msra.mxu0 %v774
    %833 = vmatprep.subr.bf16.mxu0 %v777
    %834 = vmatpush1.bf16.msra.mxu0 %v776
    %835 = vmatprep.subr.bf16.mxu0 %v779
    %836 = vmatpush1.bf16.msra.mxu0 %v778
    %837 = vmatprep.subr.bf16.mxu0 0
    %838 = vmatpush1.bf16.msra.mxu0 0
    %839 = vmatprep.subr.bf16.mxu0 0
    %840 = vmatpush1.bf16.msra.mxu0 0
    %841 = vmatprep.subr.bf16.mxu0 0
    %842 = vmatpush1.bf16.msra.mxu0 0
    %843 = vmatprep.subr.bf16.mxu0 0
    %844 = vmatpush1.bf16.msra.mxu0 0
    %845 = vmatprep.subr.bf16.mxu0 0
    %846 = vmatpush1.bf16.msra.mxu0 0
    %847 = vmatprep.subr.bf16.mxu0 0
    %848 = vmatpush1.bf16.msra.mxu0 0
    %849 = vmatprep.mubr.bf16.mxu0 %v812
    %850 = vmatmul.mubr.bf16.gmra.mrb[0].mxu0 %v804
    %v851 = vpop.f32.mrb[0].mxu0
    %v852 = vadd.f32 %v785, %v851
    %v853 = vpop.f32.mrb[0].mxu0
    %v854 = vadd.f32 %v789, %v853
    %v855 = vpop.f32.mrb[0].mxu0
    %v856 = vadd.f32 %v785, %v855
    %v857 = vpop.f32.mrb[0].mxu0
    %v858 = vadd.f32 %v789, %v857
    %859 = vmatprep.mubr.bf16.mxu0 %v815
    %860 = vmatmul.mubr.bf16.gmra.mrb[0].mxu0 %v806
    %v861 = vpop.f32.mrb[0].mxu0
    %v862 = vadd.f32 %v785, %v861
    %v863 = vpop.f32.mrb[0].mxu0
    %v864 = vadd.f32 %v789, %v863
    %v865 = vpop.f32.mrb[0].mxu0
    %v866 = vadd.f32 %v785, %v865
    %v867 = vpop.f32.mrb[0].mxu0
    %v868 = vadd.f32 %v789, %v867
    %869 = vdwg.mxu0
    %v870 = vmax.f32 %v852, 0.0
    %v871 = vmax.f32 %v854, 0.0
    %v872 = vmax.f32 %v856, 0.0
    %v873 = vmax.f32 %v858, 0.0
    %v874 = vmax.f32 %v862, 0.0
    %v875 = vmax.f32 %v864, 0.0
    %v876 = vmax.f32 %v866, 0.0
    %v877 = vmax.f32 %v868, 0.0
    %v878 = vpack.c.bf16 %v872, %v870
    %v879 = vpack.c.bf16 %v873, %v871
    %v880 = vpack.c.bf16 %v876, %v874
    %v881 = vpack.c.bf16 %v877, %v875
    %v882 = vunpack.c.l.bf16 %v878
    %v883 = vunpack.c.l.bf16 %v879
    %v884 = vunpack.c.h.bf16 %v878
    %v885 = vunpack.c.h.bf16 %v879
    %v886 = vunpack.c.l.bf16 %v880
    %v887 = vunpack.c.l.bf16 %v881
    %v888 = vunpack.c.h.bf16 %v880
    %v889 = vunpack.c.h.bf16 %v881
    %890 = vrot.lane.b32.xlu0 %v882, 1
    %v891 = vpop.permute.xlu0 %890
    %892 = vrot.lane.b32.xlu0 %v884, 1
    %v893 = vpop.permute.xlu0 %892
    %894 = vrot.lane.b32.xlu0 %v886, 1
    %v895 = vpop.permute.xlu0 %894
    %896 = vrot.lane.b32.xlu0 %v888, 1
    %v897 = vpop.permute.xlu0 %896
    %898 = vrot.lane.b32.xlu0 %v883, 1
    %v899 = vpop.permute.xlu0 %898
    %900 = vrot.lane.b32.xlu0 %v885, 1
    %v901 = vpop.permute.xlu0 %900
    %902 = vrot.lane.b32.xlu0 %v887, 1
    %v903 = vpop.permute.xlu0 %902
    %904 = vrot.lane.b32.xlu0 %v889, 1
    %v905 = vpop.permute.xlu0 %904
    %v906 = vsel %vm61, %v891, %v899
    %v907 = vsel %vm61, %v893, %v901
    %v908 = vsel %vm61, %v895, %v903
    %v909 = vsel %vm61, %v897, %v905
    %v910 = vsel %vm61, %v899, %v891
    %v911 = vsel %vm61, %v901, %v893
    %v912 = vsel %vm61, %v903, %v895
    %v913 = vsel %vm61, %v905, %v897
    %914 = vrot.lane.b32.xlu0 %v882, 127
    %v915 = vpop.permute.xlu0 %914
    %916 = vrot.lane.b32.xlu0 %v884, 127
    %v917 = vpop.permute.xlu0 %916
    %918 = vrot.lane.b32.xlu0 %v886, 127
    %v919 = vpop.permute.xlu0 %918
    %920 = vrot.lane.b32.xlu0 %v888, 127
    %v921 = vpop.permute.xlu0 %920
    %922 = vrot.lane.b32.xlu0 %v883, 127
    %v923 = vpop.permute.xlu0 %922
    %924 = vrot.lane.b32.xlu0 %v885, 127
    %v925 = vpop.permute.xlu0 %924
    %926 = vrot.lane.b32.xlu0 %v887, 127
    %v927 = vpop.permute.xlu0 %926
    %928 = vrot.lane.b32.xlu0 %v889, 127
    %v929 = vpop.permute.xlu0 %928
    %v930 = vsel %vm86, %v915, %v923
    %v931 = vsel %vm86, %v917, %v925
    %v932 = vsel %vm86, %v919, %v927
    %v933 = vsel %vm86, %v921, %v929
    %v934 = vsel %vm86, %v923, %v915
    %v935 = vsel %vm86, %v925, %v917
    %v936 = vsel %vm86, %v927, %v919
    %v937 = vsel %vm86, %v929, %v921
    %v938 = vld [vmem:[%s5] sm:$0xff]
    %v939 = vld [vmem:[%s5 + $0x8] sm:$0xff]
    %v940 = vld [vmem:[%s5 + $0x10] sm:$0xff]
    %v941 = vld [vmem:[%s5 + $0x18] sm:$0xff]
    %v942 = vlaneseq
    %v943 = vshrl.u32 %v942, 7
    %v944 = vsub.s32 0, %v943
    %v945 = vrot.slane %v938, %v944
    %v946 = vlaneseq
    %v947 = vshrl.u32 %v946, 7
    %v948 = vsub.s32 0, %v947
    %v949 = vrot.slane %v939, %v948
    %v950 = vmul.f32 %v882, %v945
    %v951 = vmul.f32 %v883, %v949
    %v952 = vmul.f32 %v884, %v945
    %v953 = vmul.f32 %v885, %v949
    %v954 = vmul.f32 %v886, %v945
    %v955 = vmul.f32 %v887, %v949
    %v956 = vmul.f32 %v888, %v945
    %v957 = vmul.f32 %v889, %v949
    %v958 = vlaneseq
    %v959 = vshrl.u32 %v958, 7
    %v960 = vsub.s32 1, %v959
    %v961 = vrot.slane %v938, %v960
    %v962 = vlaneseq
    %v963 = vshrl.u32 %v962, 7
    %v964 = vsub.s32 1, %v963
    %v965 = vrot.slane %v939, %v964
    %v966 = vmul.f32 %v910, %v961
    %v967 = vmul.f32 %v906, %v965
    %v968 = vmul.f32 %v911, %v961
    %v969 = vmul.f32 %v907, %v965
    %v970 = vmul.f32 %v912, %v961
    %v971 = vmul.f32 %v908, %v965
    %v972 = vmul.f32 %v913, %v961
    %v973 = vmul.f32 %v909, %v965
    %v974 = vadd.f32 %v950, %v966
    %v975 = vadd.f32 %v951, %v967
    %v976 = vadd.f32 %v952, %v968
    %v977 = vadd.f32 %v953, %v969
    %v978 = vadd.f32 %v954, %v970
    %v979 = vadd.f32 %v955, %v971
    %v980 = vadd.f32 %v956, %v972
    %v981 = vadd.f32 %v957, %v973
    %v982 = vlaneseq
    %v983 = vshrl.u32 %v982, 7
    %v984 = vsub.s32 2, %v983
    %v985 = vrot.slane %v938, %v984
    %v986 = vlaneseq
    %v987 = vshrl.u32 %v986, 7
    %v988 = vsub.s32 2, %v987
    %v989 = vrot.slane %v939, %v988
    %v990 = vmul.f32 %v930, %v985
    %v991 = vmul.f32 %v934, %v989
    %v992 = vmul.f32 %v931, %v985
    %v993 = vmul.f32 %v935, %v989
    %v994 = vmul.f32 %v932, %v985
    %v995 = vmul.f32 %v936, %v989
    %v996 = vmul.f32 %v933, %v985
    %v997 = vmul.f32 %v937, %v989
    %v998 = vadd.f32 %v974, %v990
    %v999 = vadd.f32 %v975, %v991
    %v1000 = vadd.f32 %v976, %v992
    %v1001 = vadd.f32 %v977, %v993
    %v1002 = vadd.f32 %v978, %v994
    %v1003 = vadd.f32 %v979, %v995
    %v1004 = vadd.f32 %v980, %v996
    %v1005 = vadd.f32 %v981, %v997
    %v1006 = vlaneseq
    %v1007 = vshrl.u32 %v1006, 7
    %v1008 = vsub.s32 3, %v1007
    %v1009 = vrot.slane %v938, %v1008
    %v1010 = vlaneseq
    %v1011 = vshrl.u32 %v1010, 7
    %v1012 = vsub.s32 3, %v1011
    %v1013 = vrot.slane %v939, %v1012
    %v1014 = vmul.f32 %v882, %v1009
    %v1015 = vmul.f32 %v883, %v1013
    %v1016 = vmul.f32 %v884, %v1009
    %v1017 = vmul.f32 %v885, %v1013
    %v1018 = vmul.f32 %v886, %v1009
    %v1019 = vmul.f32 %v887, %v1013
    %v1020 = vmul.f32 %v888, %v1009
    %v1021 = vmul.f32 %v889, %v1013
    %v1022 = vadd.f32 %v998, %v1014
    %v1023 = vadd.f32 %v999, %v1015
    %v1024 = vadd.f32 %v1000, %v1016
    %v1025 = vadd.f32 %v1001, %v1017
    %v1026 = vadd.f32 %v1002, %v1018
    %v1027 = vadd.f32 %v1003, %v1019
    %v1028 = vadd.f32 %v1004, %v1020
    %v1029 = vadd.f32 %v1005, %v1021
    %v1030 = vpack.c.bf16 %v1024, %v1022
    %v1031 = vpack.c.bf16 %v1025, %v1023
    %v1032 = vpack.c.bf16 %v1028, %v1026
    %v1033 = vpack.c.bf16 %v1029, %v1027
    %1034 = vst [vmem:[#allocation2] sm:$0xff] %v1030
    %1035 = vst [vmem:[#allocation2 + $0x8] sm:$0xff] %v1031
    %1036 = vst [vmem:[#allocation2 + $0x10] sm:$0xff] %v1032
    %1037 = vst [vmem:[#allocation2 + $0x18] sm:$0xff] %v1033
    %v1038 = vlaneseq
    %v1039 = vshrl.u32 %v1038, 7
    %v1040 = vsub.s32 4, %v1039
    %v1041 = vrot.slane %v938, %v1040
    %v1042 = vlaneseq
    %v1043 = vshrl.u32 %v1042, 7
    %v1044 = vsub.s32 4, %v1043
    %v1045 = vrot.slane %v939, %v1044
    %v1046 = vmul.f32 %v882, %v1041
    %v1047 = vmul.f32 %v883, %v1045
    %v1048 = vmul.f32 %v884, %v1041
    %v1049 = vmul.f32 %v885, %v1045
    %v1050 = vmul.f32 %v886, %v1041
    %v1051 = vmul.f32 %v887, %v1045
    %v1052 = vmul.f32 %v888, %v1041
    %v1053 = vmul.f32 %v889, %v1045
    %v1054 = vlaneseq
    %v1055 = vshrl.u32 %v1054, 7
    %v1056 = vsub.s32 5, %v1055
    %v1057 = vrot.slane %v938, %v1056
    %v1058 = vlaneseq
    %v1059 = vshrl.u32 %v1058, 7
    %v1060 = vsub.s32 5, %v1059
    %v1061 = vrot.slane %v939, %v1060
    %v1062 = vmul.f32 %v910, %v1057
    %v1063 = vmul.f32 %v906, %v1061
    %v1064 = vmul.f32 %v911, %v1057
    %v1065 = vmul.f32 %v907, %v1061
    %v1066 = vmul.f32 %v912, %v1057
    %v1067 = vmul.f32 %v908, %v1061
    %v1068 = vmul.f32 %v913, %v1057
    %v1069 = vmul.f32 %v909, %v1061
    %v1070 = vadd.f32 %v1046, %v1062
    %v1071 = vadd.f32 %v1047, %v1063
    %v1072 = vadd.f32 %v1048, %v1064
    %v1073 = vadd.f32 %v1049, %v1065
    %v1074 = vadd.f32 %v1050, %v1066
    %v1075 = vadd.f32 %v1051, %v1067
    %v1076 = vadd.f32 %v1052, %v1068
    %v1077 = vadd.f32 %v1053, %v1069
    %v1078 = vlaneseq
    %v1079 = vshrl.u32 %v1078, 7
    %v1080 = vsub.s32 6, %v1079
    %v1081 = vrot.slane %v938, %v1080
    %v1082 = vlaneseq
    %v1083 = vshrl.u32 %v1082, 7
    %v1084 = vsub.s32 6, %v1083
    %v1085 = vrot.slane %v939, %v1084
    %v1086 = vmul.f32 %v930, %v1081
    %v1087 = vmul.f32 %v934, %v1085
    %v1088 = vmul.f32 %v931, %v1081
    %v1089 = vmul.f32 %v935, %v1085
    %v1090 = vmul.f32 %v932, %v1081
    %v1091 = vmul.f32 %v936, %v1085
    %v1092 = vmul.f32 %v933, %v1081
    %v1093 = vmul.f32 %v937, %v1085
    %v1094 = vadd.f32 %v1070, %v1086
    %v1095 = vadd.f32 %v1071, %v1087
    %v1096 = vadd.f32 %v1072, %v1088
    %v1097 = vadd.f32 %v1073, %v1089
    %v1098 = vadd.f32 %v1074, %v1090
    %v1099 = vadd.f32 %v1075, %v1091
    %v1100 = vadd.f32 %v1076, %v1092
    %v1101 = vadd.f32 %v1077, %v1093
    %v1102 = vlaneseq
    %v1103 = vshrl.u32 %v1102, 7
    %v1104 = vsub.s32 7, %v1103
    %v1105 = vrot.slane %v938, %v1104
    %v1106 = vlaneseq
    %v1107 = vshrl.u32 %v1106, 7
    %v1108 = vsub.s32 7, %v1107
    %v1109 = vrot.slane %v939, %v1108
    %v1110 = vmul.f32 %v882, %v1105
    %v1111 = vmul.f32 %v883, %v1109
    %v1112 = vmul.f32 %v884, %v1105
    %v1113 = vmul.f32 %v885, %v1109
    %v1114 = vmul.f32 %v886, %v1105
    %v1115 = vmul.f32 %v887, %v1109
    %v1116 = vmul.f32 %v888, %v1105
    %v1117 = vmul.f32 %v889, %v1109
    %v1118 = vadd.f32 %v1094, %v1110
    %v1119 = vadd.f32 %v1095, %v1111
    %v1120 = vadd.f32 %v1096, %v1112
    %v1121 = vadd.f32 %v1097, %v1113
    %v1122 = vadd.f32 %v1098, %v1114
    %v1123 = vadd.f32 %v1099, %v1115
    %v1124 = vadd.f32 %v1100, %v1116
    %v1125 = vadd.f32 %v1101, %v1117
    %v1126 = vpack.c.bf16 %v1120, %v1118
    %v1127 = vpack.c.bf16 %v1121, %v1119
    %v1128 = vpack.c.bf16 %v1124, %v1122
    %v1129 = vpack.c.bf16 %v1125, %v1123
    %1130 = vst [vmem:[#allocation2 + $0x20] sm:$0xff] %v1126
    %1131 = vst [vmem:[#allocation2 + $0x28] sm:$0xff] %v1127
    %1132 = vst [vmem:[#allocation2 + $0x30] sm:$0xff] %v1128
    %1133 = vst [vmem:[#allocation2 + $0x38] sm:$0xff] %v1129
    %v1134 = vlaneseq
    %v1135 = vshrl.u32 %v1134, 7
    %v1136 = vsub.s32 0, %v1135
    %v1137 = vrot.slane %v940, %v1136
    %v1138 = vlaneseq
    %v1139 = vshrl.u32 %v1138, 7
    %v1140 = vsub.s32 0, %v1139
    %v1141 = vrot.slane %v941, %v1140
    %v1142 = vmul.f32 %v882, %v1137
    %v1143 = vmul.f32 %v883, %v1141
    %v1144 = vmul.f32 %v884, %v1137
    %v1145 = vmul.f32 %v885, %v1141
    %v1146 = vmul.f32 %v886, %v1137
    %v1147 = vmul.f32 %v887, %v1141
    %v1148 = vmul.f32 %v888, %v1137
    %v1149 = vmul.f32 %v889, %v1141
    %v1150 = vlaneseq
    %v1151 = vshrl.u32 %v1150, 7
    %v1152 = vsub.s32 1, %v1151
    %v1153 = vrot.slane %v940, %v1152
    %v1154 = vlaneseq
    %v1155 = vshrl.u32 %v1154, 7
    %v1156 = vsub.s32 1, %v1155
    %v1157 = vrot.slane %v941, %v1156
    %v1158 = vmul.f32 %v910, %v1153
    %v1159 = vmul.f32 %v906, %v1157
    %v1160 = vmul.f32 %v911, %v1153
    %v1161 = vmul.f32 %v907, %v1157
    %v1162 = vmul.f32 %v912, %v1153
    %v1163 = vmul.f32 %v908, %v1157
    %v1164 = vmul.f32 %v913, %v1153
    %v1165 = vmul.f32 %v909, %v1157
    %v1166 = vadd.f32 %v1142, %v1158
    %v1167 = vadd.f32 %v1143, %v1159
    %v1168 = vadd.f32 %v1144, %v1160
    %v1169 = vadd.f32 %v1145, %v1161
    %v1170 = vadd.f32 %v1146, %v1162
    %v1171 = vadd.f32 %v1147, %v1163
    %v1172 = vadd.f32 %v1148, %v1164
    %v1173 = vadd.f32 %v1149, %v1165
    %v1174 = vlaneseq
    %v1175 = vshrl.u32 %v1174, 7
    %v1176 = vsub.s32 2, %v1175
    %v1177 = vrot.slane %v940, %v1176
    %v1178 = vlaneseq
    %v1179 = vshrl.u32 %v1178, 7
    %v1180 = vsub.s32 2, %v1179
    %v1181 = vrot.slane %v941, %v1180
    %v1182 = vmul.f32 %v930, %v1177
    %v1183 = vmul.f32 %v934, %v1181
    %v1184 = vmul.f32 %v931, %v1177
    %v1185 = vmul.f32 %v935, %v1181
    %v1186 = vmul.f32 %v932, %v1177
    %v1187 = vmul.f32 %v936, %v1181
    %v1188 = vmul.f32 %v933, %v1177
    %v1189 = vmul.f32 %v937, %v1181
    %v1190 = vadd.f32 %v1166, %v1182
    %v1191 = vadd.f32 %v1167, %v1183
    %v1192 = vadd.f32 %v1168, %v1184
    %v1193 = vadd.f32 %v1169, %v1185
    %v1194 = vadd.f32 %v1170, %v1186
    %v1195 = vadd.f32 %v1171, %v1187
    %v1196 = vadd.f32 %v1172, %v1188
    %v1197 = vadd.f32 %v1173, %v1189
    %v1198 = vlaneseq
    %v1199 = vshrl.u32 %v1198, 7
    %v1200 = vsub.s32 3, %v1199
    %v1201 = vrot.slane %v940, %v1200
    %v1202 = vlaneseq
    %v1203 = vshrl.u32 %v1202, 7
    %v1204 = vsub.s32 3, %v1203
    %v1205 = vrot.slane %v941, %v1204
    %v1206 = vmul.f32 %v882, %v1201
    %v1207 = vmul.f32 %v883, %v1205
    %v1208 = vmul.f32 %v884, %v1201
    %v1209 = vmul.f32 %v885, %v1205
    %v1210 = vmul.f32 %v886, %v1201
    %v1211 = vmul.f32 %v887, %v1205
    %v1212 = vmul.f32 %v888, %v1201
    %v1213 = vmul.f32 %v889, %v1205
    %v1214 = vadd.f32 %v1190, %v1206
    %v1215 = vadd.f32 %v1191, %v1207
    %v1216 = vadd.f32 %v1192, %v1208
    %v1217 = vadd.f32 %v1193, %v1209
    %v1218 = vadd.f32 %v1194, %v1210
    %v1219 = vadd.f32 %v1195, %v1211
    %v1220 = vadd.f32 %v1196, %v1212
    %v1221 = vadd.f32 %v1197, %v1213
    %v1222 = vpack.c.bf16 %v1216, %v1214
    %v1223 = vpack.c.bf16 %v1217, %v1215
    %v1224 = vpack.c.bf16 %v1220, %v1218
    %v1225 = vpack.c.bf16 %v1221, %v1219
    %1226 = vst [vmem:[#allocation2 + $0x40] sm:$0xff] %v1222
    %1227 = vst [vmem:[#allocation2 + $0x48] sm:$0xff] %v1223
    %1228 = vst [vmem:[#allocation2 + $0x50] sm:$0xff] %v1224
    %1229 = vst [vmem:[#allocation2 + $0x58] sm:$0xff] %v1225
    %v1230 = vlaneseq
    %v1231 = vshrl.u32 %v1230, 7
    %v1232 = vsub.s32 4, %v1231
    %v1233 = vrot.slane %v940, %v1232
    %v1234 = vlaneseq
    %v1235 = vshrl.u32 %v1234, 7
    %v1236 = vsub.s32 4, %v1235
    %v1237 = vrot.slane %v941, %v1236
    %v1238 = vmul.f32 %v882, %v1233
    %v1239 = vmul.f32 %v883, %v1237
    %v1240 = vmul.f32 %v884, %v1233
    %v1241 = vmul.f32 %v885, %v1237
    %v1242 = vmul.f32 %v886, %v1233
    %v1243 = vmul.f32 %v887, %v1237
    %v1244 = vmul.f32 %v888, %v1233
    %v1245 = vmul.f32 %v889, %v1237
    %v1246 = vlaneseq
    %v1247 = vshrl.u32 %v1246, 7
    %v1248 = vsub.s32 5, %v1247
    %v1249 = vrot.slane %v940, %v1248
    %v1250 = vlaneseq
    %v1251 = vshrl.u32 %v1250, 7
    %v1252 = vsub.s32 5, %v1251
    %v1253 = vrot.slane %v941, %v1252
    %v1254 = vmul.f32 %v910, %v1249
    %v1255 = vmul.f32 %v906, %v1253
    %v1256 = vmul.f32 %v911, %v1249
    %v1257 = vmul.f32 %v907, %v1253
    %v1258 = vmul.f32 %v912, %v1249
    %v1259 = vmul.f32 %v908, %v1253
    %v1260 = vmul.f32 %v913, %v1249
    %v1261 = vmul.f32 %v909, %v1253
    %v1262 = vadd.f32 %v1238, %v1254
    %v1263 = vadd.f32 %v1239, %v1255
    %v1264 = vadd.f32 %v1240, %v1256
    %v1265 = vadd.f32 %v1241, %v1257
    %v1266 = vadd.f32 %v1242, %v1258
    %v1267 = vadd.f32 %v1243, %v1259
    %v1268 = vadd.f32 %v1244, %v1260
    %v1269 = vadd.f32 %v1245, %v1261
    %v1270 = vlaneseq
    %v1271 = vshrl.u32 %v1270, 7
    %v1272 = vsub.s32 6, %v1271
    %v1273 = vrot.slane %v940, %v1272
    %v1274 = vlaneseq
    %v1275 = vshrl.u32 %v1274, 7
    %v1276 = vsub.s32 6, %v1275
    %v1277 = vrot.slane %v941, %v1276
    %v1278 = vmul.f32 %v930, %v1273
    %v1279 = vmul.f32 %v934, %v1277
    %v1280 = vmul.f32 %v931, %v1273
    %v1281 = vmul.f32 %v935, %v1277
    %v1282 = vmul.f32 %v932, %v1273
    %v1283 = vmul.f32 %v936, %v1277
    %v1284 = vmul.f32 %v933, %v1273
    %v1285 = vmul.f32 %v937, %v1277
    %v1286 = vadd.f32 %v1262, %v1278
    %v1287 = vadd.f32 %v1263, %v1279
    %v1288 = vadd.f32 %v1264, %v1280
    %v1289 = vadd.f32 %v1265, %v1281
    %v1290 = vadd.f32 %v1266, %v1282
    %v1291 = vadd.f32 %v1267, %v1283
    %v1292 = vadd.f32 %v1268, %v1284
    %v1293 = vadd.f32 %v1269, %v1285
    %v1294 = vlaneseq
    %v1295 = vshrl.u32 %v1294, 7
    %v1296 = vsub.s32 7, %v1295
    %v1297 = vrot.slane %v940, %v1296
    %v1298 = vlaneseq
    %v1299 = vshrl.u32 %v1298, 7
    %v1300 = vsub.s32 7, %v1299
    %v1301 = vrot.slane %v941, %v1300
    %v1302 = vmul.f32 %v882, %v1297
    %v1303 = vmul.f32 %v883, %v1301
    %v1304 = vmul.f32 %v884, %v1297
    %v1305 = vmul.f32 %v885, %v1301
    %v1306 = vmul.f32 %v886, %v1297
    %v1307 = vmul.f32 %v887, %v1301
    %v1308 = vmul.f32 %v888, %v1297
    %v1309 = vmul.f32 %v889, %v1301
    %v1310 = vadd.f32 %v1286, %v1302
    %v1311 = vadd.f32 %v1287, %v1303
    %v1312 = vadd.f32 %v1288, %v1304
    %v1313 = vadd.f32 %v1289, %v1305
    %v1314 = vadd.f32 %v1290, %v1306
    %v1315 = vadd.f32 %v1291, %v1307
    %v1316 = vadd.f32 %v1292, %v1308
    %v1317 = vadd.f32 %v1293, %v1309
    %v1318 = vpack.c.bf16 %v1312, %v1310
    %v1319 = vpack.c.bf16 %v1313, %v1311
    %v1320 = vpack.c.bf16 %v1316, %v1314
    %v1321 = vpack.c.bf16 %v1317, %v1315
    %1322 = vst [vmem:[#allocation2 + $0x60] sm:$0xff] %v1318
    %1323 = vst [vmem:[#allocation2 + $0x68] sm:$0xff] %v1319
    %1324 = vst [vmem:[#allocation2 + $0x70] sm:$0xff] %v1320
    %1325 = vst [vmem:[#allocation2 + $0x78] sm:$0xff] %v1321
    %v1326 = vld [vmem:[%s6] sm:$0xff]
    %v1327 = vld [vmem:[%s6 + $0x8] sm:$0xff]
    %v1328 = vld [vmem:[%s6 + $0x10] sm:$0xff]
    %v1329 = vld [vmem:[%s6 + $0x18] sm:$0xff]
    %v1330 = vld [vmem:[%s6 + $0x20] sm:$0xff]
    %v1331 = vld [vmem:[%s6 + $0x28] sm:$0xff]
    %v1332 = vld [vmem:[%s6 + $0x30] sm:$0xff]
    %v1333 = vld [vmem:[%s6 + $0x38] sm:$0xff]
    %v1334 = vld [vmem:[%s6 + $0x40] sm:$0xff]
    %v1335 = vld [vmem:[%s6 + $0x48] sm:$0xff]
    %v1336 = vld [vmem:[%s6 + $0x50] sm:$0xff]
    %v1337 = vld [vmem:[%s6 + $0x58] sm:$0xff]
    %v1338 = vld [vmem:[%s6 + $0x60] sm:$0xff]
    %v1339 = vld [vmem:[%s6 + $0x68] sm:$0xff]
    %v1340 = vld [vmem:[%s6 + $0x70] sm:$0xff]
    %v1341 = vld [vmem:[%s6 + $0x78] sm:$0xff]
    %v1342 = vld [vmem:[%s6 + $0x80] sm:$0xff]
    %v1343 = vld [vmem:[%s6 + $0x88] sm:$0xff]
    %v1344 = vld [vmem:[%s6 + $0x90] sm:$0xff]
    %v1345 = vld [vmem:[%s6 + $0x98] sm:$0xff]
    %v1346 = vld [vmem:[%s6 + $0xa0] sm:$0xff]
    %v1347 = vld [vmem:[%s6 + $0xa8] sm:$0xff]
    %v1348 = vld [vmem:[%s6 + $0xb0] sm:$0xff]
    %v1349 = vld [vmem:[%s6 + $0xb8] sm:$0xff]
    %v1350 = vld [vmem:[%s6 + $0xc0] sm:$0xff]
    %v1351 = vld [vmem:[%s6 + $0xc8] sm:$0xff]
    %v1352 = vld [vmem:[%s6 + $0xd0] sm:$0xff]
    %v1353 = vld [vmem:[%s6 + $0xd8] sm:$0xff]
    %v1354 = vld [vmem:[%s6 + $0xe0] sm:$0xff]
    %v1355 = vld [vmem:[%s6 + $0xe8] sm:$0xff]
    %v1356 = vld [vmem:[%s6 + $0xf0] sm:$0xff]
    %v1357 = vld [vmem:[%s6 + $0xf8] sm:$0xff]
    %v1390 = vunpack.c.l.b16 %v1326
    %v1391 = vunpack.c.h.b16 %v1326
    %v1392 = vunpack.c.l.b16 %v1327
    %v1393 = vunpack.c.h.b16 %v1327
    %v1394 = vunpack.c.l.b16 %v1328
    %v1395 = vunpack.c.h.b16 %v1328
    %v1396 = vunpack.c.l.b16 %v1329
    %v1397 = vunpack.c.h.b16 %v1329
    %v1398 = vunpack.c.l.b16 %v1330
    %v1399 = vunpack.c.h.b16 %v1330
    %v1400 = vunpack.c.l.b16 %v1331
    %v1401 = vunpack.c.h.b16 %v1331
    %v1402 = vunpack.c.l.b16 %v1332
    %v1403 = vunpack.c.h.b16 %v1332
    %v1404 = vunpack.c.l.b16 %v1333
    %v1405 = vunpack.c.h.b16 %v1333
    %v1406 = vunpack.c.l.b16 %v1334
    %v1407 = vunpack.c.h.b16 %v1334
    %v1408 = vunpack.c.l.b16 %v1335
    %v1409 = vunpack.c.h.b16 %v1335
    %v1410 = vunpack.c.l.b16 %v1336
    %v1411 = vunpack.c.h.b16 %v1336
    %v1412 = vunpack.c.l.b16 %v1337
    %v1413 = vunpack.c.h.b16 %v1337
    %v1414 = vunpack.c.l.b16 %v1338
    %v1415 = vunpack.c.h.b16 %v1338
    %v1416 = vunpack.c.l.b16 %v1339
    %v1417 = vunpack.c.h.b16 %v1339
    %v1418 = vunpack.c.l.b16 %v1340
    %v1419 = vunpack.c.h.b16 %v1340
    %v1420 = vunpack.c.l.b16 %v1341
    %v1421 = vunpack.c.h.b16 %v1341
    %v1422 = vunpack.c.l.b16 %v1342
    %v1423 = vunpack.c.h.b16 %v1342
    %v1424 = vunpack.c.l.b16 %v1343
    %v1425 = vunpack.c.h.b16 %v1343
    %v1426 = vunpack.c.l.b16 %v1344
    %v1427 = vunpack.c.h.b16 %v1344
    %v1428 = vunpack.c.l.b16 %v1345
    %v1429 = vunpack.c.h.b16 %v1345
    %v1430 = vunpack.c.l.b16 %v1346
    %v1431 = vunpack.c.h.b16 %v1346
    %v1432 = vunpack.c.l.b16 %v1347
    %v1433 = vunpack.c.h.b16 %v1347
    %v1434 = vunpack.c.l.b16 %v1348
    %v1435 = vunpack.c.h.b16 %v1348
    %v1436 = vunpack.c.l.b16 %v1349
    %v1437 = vunpack.c.h.b16 %v1349
    %v1438 = vunpack.c.l.b16 %v1350
    %v1439 = vunpack.c.h.b16 %v1350
    %v1440 = vunpack.c.l.b16 %v1351
    %v1441 = vunpack.c.h.b16 %v1351
    %v1442 = vunpack.c.l.b16 %v1352
    %v1443 = vunpack.c.h.b16 %v1352
    %v1444 = vunpack.c.l.b16 %v1353
    %v1445 = vunpack.c.h.b16 %v1353
    %v1446 = vunpack.c.l.b16 %v1354
    %v1447 = vunpack.c.h.b16 %v1354
    %v1448 = vunpack.c.l.b16 %v1355
    %v1449 = vunpack.c.h.b16 %v1355
    %v1450 = vunpack.c.l.b16 %v1356
    %v1451 = vunpack.c.h.b16 %v1356
    %v1452 = vunpack.c.l.b16 %v1357
    %v1453 = vunpack.c.h.b16 %v1357
    %v1454 = vpack.c.b16 %v1392, %v1390
    %v1455 = vpack.c.b16 %v1393, %v1391
    %v1456 = vpack.c.b16 %v1396, %v1394
    %v1457 = vpack.c.b16 %v1397, %v1395
    %v1458 = vpack.c.b16 %v1400, %v1398
    %v1459 = vpack.c.b16 %v1401, %v1399
    %v1460 = vpack.c.b16 %v1404, %v1402
    %v1461 = vpack.c.b16 %v1405, %v1403
    %v1462 = vpack.c.b16 %v1408, %v1406
    %v1463 = vpack.c.b16 %v1409, %v1407
    %v1464 = vpack.c.b16 %v1412, %v1410
    %v1465 = vpack.c.b16 %v1413, %v1411
    %v1466 = vpack.c.b16 %v1416, %v1414
    %v1467 = vpack.c.b16 %v1417, %v1415
    %v1468 = vpack.c.b16 %v1420, %v1418
    %v1469 = vpack.c.b16 %v1421, %v1419
    %v1470 = vpack.c.b16 %v1424, %v1422
    %v1471 = vpack.c.b16 %v1425, %v1423
    %v1472 = vpack.c.b16 %v1428, %v1426
    %v1473 = vpack.c.b16 %v1429, %v1427
    %v1474 = vpack.c.b16 %v1432, %v1430
    %v1475 = vpack.c.b16 %v1433, %v1431
    %v1476 = vpack.c.b16 %v1436, %v1434
    %v1477 = vpack.c.b16 %v1437, %v1435
    %v1478 = vpack.c.b16 %v1440, %v1438
    %v1479 = vpack.c.b16 %v1441, %v1439
    %v1480 = vpack.c.b16 %v1444, %v1442
    %v1481 = vpack.c.b16 %v1445, %v1443
    %v1482 = vpack.c.b16 %v1448, %v1446
    %v1483 = vpack.c.b16 %v1449, %v1447
    %v1484 = vpack.c.b16 %v1452, %v1450
    %v1485 = vpack.c.b16 %v1453, %v1451
    %1518 = vmatprep.subr.bf16.mxu0 %v1455
    %1519 = vmatpush1.bf16.msra.mxu0 %v1454
    %1520 = vmatprep.subr.bf16.mxu0 %v1457
    %1521 = vmatpush1.bf16.msra.mxu0 %v1456
    %1522 = vmatprep.subr.bf16.mxu0 %v1459
    %1523 = vmatpush1.bf16.msra.mxu0 %v1458
    %1524 = vmatprep.subr.bf16.mxu0 %v1461
    %1525 = vmatpush1.bf16.msra.mxu0 %v1460
    %1526 = vmatprep.subr.bf16.mxu0 %v1463
    %1527 = vmatpush1.bf16.msra.mxu0 %v1462
    %1528 = vmatprep.subr.bf16.mxu0 %v1465
    %1529 = vmatpush1.bf16.msra.mxu0 %v1464
    %1530 = vmatprep.subr.bf16.mxu0 %v1467
    %1531 = vmatpush1.bf16.msra.mxu0 %v1466
    %1532 = vmatprep.subr.bf16.mxu0 %v1469
    %1533 = vmatpush1.bf16.msra.mxu0 %v1468
    %1534 = vmatprep.subr.bf16.mxu0 %v1471
    %1535 = vmatpush1.bf16.msra.mxu0 %v1470
    %1536 = vmatprep.subr.bf16.mxu0 %v1473
    %1537 = vmatpush1.bf16.msra.mxu0 %v1472
    %1538 = vmatprep.subr.bf16.mxu0 %v1475
    %1539 = vmatpush1.bf16.msra.mxu0 %v1474
    %1540 = vmatprep.subr.bf16.mxu0 %v1477
    %1541 = vmatpush1.bf16.msra.mxu0 %v1476
    %1542 = vmatprep.subr.bf16.mxu0 %v1479
    %1543 = vmatpush1.bf16.msra.mxu0 %v1478
    %1544 = vmatprep.subr.bf16.mxu0 %v1481
    %1545 = vmatpush1.bf16.msra.mxu0 %v1480
    %1546 = vmatprep.subr.bf16.mxu0 %v1483
    %1547 = vmatpush1.bf16.msra.mxu0 %v1482
    %1548 = vmatprep.subr.bf16.mxu0 %v1485
    %1549 = vmatpush1.bf16.msra.mxu0 %v1484
    %1550 = vmatprep.mubr.bf16.mxu0 %v879
    %1551 = vmatmul.mubr.bf16.gmra.mrb[0].mxu0 %v878
    %v1552 = vpop.f32.mrb[0].mxu0
    %v1553 = vadd.f32 0.0, %v1552
    %v1554 = vpop.f32.mrb[0].mxu0
    %v1555 = vadd.f32 0.0, %v1554
    %v1556 = vpop.f32.mrb[0].mxu0
    %v1557 = vadd.f32 0.0, %v1556
    %v1558 = vpop.f32.mrb[0].mxu0
    %v1559 = vadd.f32 0.0, %v1558
    %1560 = vmatprep.mubr.bf16.mxu0 %v881
    %1561 = vmatmul.mubr.bf16.gmra.mrb[0].mxu0 %v880
    %v1562 = vpop.f32.mrb[0].mxu0
    %v1563 = vadd.f32 0.0, %v1562
    %v1564 = vpop.f32.mrb[0].mxu0
    %v1565 = vadd.f32 0.0, %v1564
    %v1566 = vpop.f32.mrb[0].mxu0
    %v1567 = vadd.f32 0.0, %v1566
    %v1568 = vpop.f32.mrb[0].mxu0
    %v1569 = vadd.f32 0.0, %v1568
    %1570 = vdwg.mxu0
    %v1571 = vpack.c.bf16 %v1557, %v1553
    %v1572 = vpack.c.bf16 %v1559, %v1555
    %v1573 = vpack.c.bf16 %v1567, %v1563
    %v1574 = vpack.c.bf16 %v1569, %v1565
    %1575 = vst [vmem:[#allocation2 + $0x80] sm:$0xff] %v1571
    %1576 = vst [vmem:[#allocation2 + $0x88] sm:$0xff] %v1572
    %1577 = vst [vmem:[#allocation2 + $0x90] sm:$0xff] %v1573
    %1578 = vst [vmem:[#allocation2 + $0x98] sm:$0xff] %v1574
    %v1579 = vld [vmem:[%s0] sm:$0xff]
    %v1580 = vld [vmem:[%s0 + $0x8] sm:$0xff]
    %v1581 = vld [vmem:[%s0 + $0x10] sm:$0xff]
    %v1582 = vld [vmem:[%s0 + $0x18] sm:$0xff]
    %v1583 = vld [vmem:[#allocation2] sm:$0xff]
    %v1584 = vld [vmem:[#allocation2 + $0x8] sm:$0xff]
    %v1585 = vld [vmem:[#allocation2 + $0x10] sm:$0xff]
    %v1586 = vld [vmem:[#allocation2 + $0x18] sm:$0xff]
    %v1587 = vld [vmem:[#allocation2 + $0x20] sm:$0xff]
    %v1588 = vld [vmem:[#allocation2 + $0x28] sm:$0xff]
    %v1589 = vld [vmem:[#allocation2 + $0x30] sm:$0xff]
    %v1590 = vld [vmem:[#allocation2 + $0x38] sm:$0xff]
    %v1591 = vld [vmem:[#allocation2 + $0x40] sm:$0xff]
    %v1592 = vld [vmem:[#allocation2 + $0x48] sm:$0xff]
    %v1593 = vld [vmem:[#allocation2 + $0x50] sm:$0xff]
    %v1594 = vld [vmem:[#allocation2 + $0x58] sm:$0xff]
    %v1595 = vld [vmem:[#allocation2 + $0x60] sm:$0xff]
    %v1596 = vld [vmem:[#allocation2 + $0x68] sm:$0xff]
    %v1597 = vld [vmem:[#allocation2 + $0x70] sm:$0xff]
    %v1598 = vld [vmem:[#allocation2 + $0x78] sm:$0xff]
    %v1599 = vld [vmem:[#allocation2 + $0x80] sm:$0xff]
    %v1600 = vld [vmem:[#allocation2 + $0x88] sm:$0xff]
    %v1601 = vld [vmem:[#allocation2 + $0x90] sm:$0xff]
    %v1602 = vld [vmem:[#allocation2 + $0x98] sm:$0xff]
    %v1603 = vld [vmem:[%s7] sm:$0x3]
    %v1605 = vlaneseq
    %v1606 = vshrl.u32 %v1605, 7
    %v1607 = vsub.s32 0, %v1606
    %v1608 = vrot.slane %v1603, %v1607
    %v1609 = vlaneseq
    %v1610 = vshrl.u32 %v1609, 7
    %v1611 = vsub.s32 1, %v1610
    %v1612 = vrot.slane %v1603, %v1611
    %v1619 = vunpack.c.l.b16 %v1579
    %v1620 = vunpack.c.h.b16 %v1579
    %v1621 = vunpack.c.l.b16 %v1580
    %v1622 = vunpack.c.h.b16 %v1580
    %v1623 = vunpack.c.l.b16 %v1581
    %v1624 = vunpack.c.h.b16 %v1581
    %v1625 = vunpack.c.l.b16 %v1582
    %v1626 = vunpack.c.h.b16 %v1582
    %v1627 = vpack.c.b16 %v1621, %v1619
    %v1628 = vpack.c.b16 %v1622, %v1620
    %v1629 = vpack.c.b16 %v1625, %v1623
    %v1630 = vpack.c.b16 %v1626, %v1624
    %v1634 = vsel %vm810, %v1628, 0
    %v1637 = vsel %vm810, %v1630, 0
    %1639 = vmatprep.subr.bf16.mxu0 %v1584
    %1640 = vmatpush1.bf16.msra.mxu0 %v1583
    %1641 = vmatprep.subr.bf16.mxu0 %v1586
    %1642 = vmatpush1.bf16.msra.mxu0 %v1585
    %1643 = vmatprep.subr.bf16.mxu0 %v1588
    %1644 = vmatpush1.bf16.msra.mxu0 %v1587
    %1645 = vmatprep.subr.bf16.mxu0 %v1590
    %1646 = vmatpush1.bf16.msra.mxu0 %v1589
    %1647 = vmatprep.subr.bf16.mxu0 %v1592
    %1648 = vmatpush1.bf16.msra.mxu0 %v1591
    %1649 = vmatprep.subr.bf16.mxu0 %v1594
    %1650 = vmatpush1.bf16.msra.mxu0 %v1593
    %1651 = vmatprep.subr.bf16.mxu0 %v1596
    %1652 = vmatpush1.bf16.msra.mxu0 %v1595
    %1653 = vmatprep.subr.bf16.mxu0 %v1598
    %1654 = vmatpush1.bf16.msra.mxu0 %v1597
    %1655 = vmatprep.subr.bf16.mxu0 %v1600
    %1656 = vmatpush1.bf16.msra.mxu0 %v1599
    %1657 = vmatprep.subr.bf16.mxu0 %v1602
    %1658 = vmatpush1.bf16.msra.mxu0 %v1601
    %1659 = vmatprep.subr.bf16.mxu0 0
    %1660 = vmatpush1.bf16.msra.mxu0 0
    %1661 = vmatprep.subr.bf16.mxu0 0
    %1662 = vmatpush1.bf16.msra.mxu0 0
    %1663 = vmatprep.subr.bf16.mxu0 0
    %1664 = vmatpush1.bf16.msra.mxu0 0
    %1665 = vmatprep.subr.bf16.mxu0 0
    %1666 = vmatpush1.bf16.msra.mxu0 0
    %1667 = vmatprep.subr.bf16.mxu0 0
    %1668 = vmatpush1.bf16.msra.mxu0 0
    %1669 = vmatprep.subr.bf16.mxu0 0
    %1670 = vmatpush1.bf16.msra.mxu0 0
    %1671 = vmatprep.mubr.bf16.mxu0 %v1634
    %1672 = vmatmul.mubr.bf16.gmra.mrb[0].mxu0 %v1627
    %v1673 = vpop.f32.mrb[0].mxu0
    %v1674 = vadd.f32 %v1608, %v1673
    %v1675 = vpop.f32.mrb[0].mxu0
    %v1676 = vadd.f32 %v1612, %v1675
    %v1677 = vpop.f32.mrb[0].mxu0
    %v1678 = vadd.f32 %v1608, %v1677
    %v1679 = vpop.f32.mrb[0].mxu0
    %v1680 = vadd.f32 %v1612, %v1679
    %1681 = vmatprep.mubr.bf16.mxu0 %v1637
    %1682 = vmatmul.mubr.bf16.gmra.mrb[0].mxu0 %v1629
    %v1683 = vpop.f32.mrb[0].mxu0
    %v1684 = vadd.f32 %v1608, %v1683
    %v1685 = vpop.f32.mrb[0].mxu0
    %v1686 = vadd.f32 %v1612, %v1685
    %v1687 = vpop.f32.mrb[0].mxu0
    %v1688 = vadd.f32 %v1608, %v1687
    %v1689 = vpop.f32.mrb[0].mxu0
    %v1690 = vadd.f32 %v1612, %v1689
    %1691 = vdwg.mxu0
    %1692 = vst [vmem:[#allocation3] sm:$0xff] %v1674
    %1693 = vst [vmem:[#allocation3 + $0x8] sm:$0xff] %v1676
    %1694 = vst [vmem:[#allocation3 + $0x10] sm:$0xff] %v1678
    %1695 = vst [vmem:[#allocation3 + $0x18] sm:$0xff] %v1680
    %1696 = vst [vmem:[#allocation3 + $0x20] sm:$0xff] %v1684
    %1697 = vst [vmem:[#allocation3 + $0x28] sm:$0xff] %v1686
    %1698 = vst [vmem:[#allocation3 + $0x30] sm:$0xff] %v1688
    %1699 = vst [vmem:[#allocation3 + $0x38] sm:$0xff] %v1690
    // Predicated region
    $region34: #{rgcn_forward.1} parent=1 // pred_check
      _
    $region35: #{rgcn_forward.1} parent=1 // pred_check_branch
      %1701 = sbr.rel (0) target = $region37
    $region36: #{rgcn_forward.1} parent=1 // pred_region
      %s1703 = ssub.s32 1024, 1024
      %1704 = vsyncadd [#allocation4], %s1703
      %s1705 = sshll.u32 [#allocation3], 4
      %s1706 = int_to_ptr.vmem [resolvable:$true] %s1705
      %1711 = dma.vmem_to_hbm [thread:$0]  %s1706, 1024, %s8, [#allocation4], 256, 256, 16
    $region37: #{rgcn_forward.1} parent=1 // pred_fallthru
      _
    // Predicated region
    $region38: #{rgcn_forward.1} parent=1 // pred_check
      _
    $region39: #{rgcn_forward.1} parent=1 // pred_check_branch
      %1713 = sbr.rel (0) target = $region41
    $region40: #{rgcn_forward.1} parent=1 // pred_region
      %1714 = dma.done [#allocation4], 1024
    $region41: #{rgcn_forward.1} parent=1 // pred_fallthru
      _
    %1715 = vsyncpa [#allocation4], 1

</llo_original>
